<compile_context>
chip_gen: v7x
topology: tpu7x:2x2x1
jax: 0.10.0
libtpu: 0.0.40
codegen_flags: <defaults>
</compile_context>

<pallas_src>
import functools
import math

import jax
import jax.numpy as jnp
from jax import lax
from jax.experimental import pallas as pl
from jax.experimental.pallas import tpu as pltpu


def _round_up(x, m):
    return ((x + m - 1) // m) * m


def _head_kernel(pooled_ref, fhat_ref, wlin_ref, blin_ref, warc_ref,
                 logits_ref, arc_ref):
    """One class-tile step (pure weight-streaming GEMMs, f32 accumulation).

    pooled_ref: (B_pad, C)  bf16 globally avg-pooled features
    fhat_ref:   (B_pad, C)  bf16 L2-normalized pooled features
    wlin_ref:   (TN, C)     bf16 last_linear weight tile
    blin_ref:   (1, TN)     f32  last_linear bias tile
    warc_ref:   (TN, C)     bf16 ArcMargin weight tile (rows pre-normalized)
    logits_ref: (B_pad, TN) f32  last_linear output tile
    arc_ref:    (B_pad, TN) f32  arc-cosine output tile
    """
    dn = (((1,), (1,)), ((), ()))   # contract the C dim of both operands

    # last_linear: logits = pooled @ W_lin.T + b   (dropout == eval identity)
    logits = lax.dot_general(pooled_ref[...], wlin_ref[...], dn,
                             preferred_element_type=jnp.float32)
    logits_ref[...] = logits + blin_ref[...]

    # ArcMarginProduct: cosine = normalize(pooled) @ normalize(W_arc).T
    # (both normalizations precomputed in f32 outside the kernel)
    arc_ref[...] = lax.dot_general(fhat_ref[...], warc_ref[...], dn,
                                   preferred_element_type=jnp.float32)


def prepare_head_params(w_lin, b_lin, w_arc, *, block_nc=1024):
    """One-time (model-load) weight preparation: pad to a lane-dense class
    count, pre-normalize ArcMargin rows in f32, and cast the streams to bf16."""
    assert block_nc % 128 == 0, "class-tile size must be lane-dense"
    NC, C = w_lin.shape
    assert C % 128 == 0, "channel dim must be a multiple of 128"

    tn = min(block_nc, _round_up(NC, 128))
    nc_pad = _round_up(NC, tn)
    pad = nc_pad - NC

    w_lin_p = jnp.pad(w_lin.astype(jnp.bfloat16), ((0, pad), (0, 0)))
    b_lin_p = jnp.pad(b_lin.astype(jnp.float32), ((0, pad),)).reshape(1, nc_pad)

    w_arc_f32 = w_arc.astype(jnp.float32)
    row_norm = jnp.sqrt(jnp.sum(w_arc_f32 * w_arc_f32, axis=1, keepdims=True))
    w_arc_hat = (w_arc_f32 / jnp.maximum(row_norm, 1e-12)).astype(jnp.bfloat16)
    w_arc_p = jnp.pad(w_arc_hat, ((0, pad), (0, 0)))

    return {"w_lin": w_lin_p, "b_lin": b_lin_p, "w_arc": w_arc_p,
            "nc": int(NC), "tn": int(tn)}


@functools.partial(jax.jit, static_argnames=("nc", "tn"))
def _head_forward(feat_nchw, w_lin_p, b_lin_p, w_arc_p, *, nc, tn):
    B, C, H, W = feat_nchw.shape
    nc_pad = w_lin_p.shape[0]
    n_tiles = nc_pad // tn
    B_pad = _round_up(B, 8)

    # --- global average pool + F.normalize(p=2, eps=1e-12), all in f32.
    pooled = jnp.mean(feat_nchw.astype(jnp.float32), axis=(2, 3))       # (B, C)
    fnorm = jnp.sqrt(jnp.sum(pooled * pooled, axis=1, keepdims=True))   # (B, 1)
    fhat = pooled / jnp.maximum(fnorm, 1e-12)

    pooled_b = jnp.pad(pooled.astype(jnp.bfloat16), ((0, B_pad - B), (0, 0)))
    fhat_b = jnp.pad(fhat.astype(jnp.bfloat16), ((0, B_pad - B), (0, 0)))

    grid_spec = pltpu.PrefetchScalarGridSpec(
        num_scalar_prefetch=0,
        grid=(n_tiles,),
        in_specs=[
            # tiny activations: constant block index (resident across tiles)
            pl.BlockSpec((B_pad, C), lambda i: (0, 0)),
            pl.BlockSpec((B_pad, C), lambda i: (0, 0)),
            pl.BlockSpec((tn, C), lambda i: (i, 0)),      # last_linear weight tile
            pl.BlockSpec((1, tn), lambda i: (0, i)),      # last_linear bias tile
            pl.BlockSpec((tn, C), lambda i: (i, 0)),      # arc weight tile (pre-normalized)
        ],
        out_specs=(
            pl.BlockSpec((B_pad, tn), lambda i: (0, i)),
            pl.BlockSpec((B_pad, tn), lambda i: (0, i)),
        ),
    )

    # VMEM budget from the actual double-buffered tile sizes (+2x headroom),
    # capped at 48 MiB so it fits inside v7x's 64 MiB physical VMEM per core.
    weight_tile_bytes = tn * C * 2
    out_tile_bytes = B_pad * tn * 4
    act_bytes = 2 * B_pad * C * 2
    vmem_bytes = (2 * (2 * weight_tile_bytes + 2 * out_tile_bytes)
                  + 2 * (act_bytes + tn * 4))
    vmem_limit = int(min(max(2 * vmem_bytes, 16 << 20), 48 << 20))

    cost = pl.CostEstimate(
        flops=2 * 2 * B_pad * nc_pad * C,
        transcendentals=0,
        bytes_accessed=(2 * nc_pad * C * 2        # two bf16 weight streams
                        + 2 * B_pad * C * 2       # pooled + fhat (bf16)
                        + nc_pad * 4              # bias
                        + 2 * B_pad * nc_pad * 4),  # two f32 outputs
    )

    logits_p, arc_p = pl.pallas_call(
        _head_kernel,
        out_shape=(jax.ShapeDtypeStruct((B_pad, nc_pad), jnp.float32),
                   jax.ShapeDtypeStruct((B_pad, nc_pad), jnp.float32)),
        grid_spec=grid_spec,
        compiler_params=pltpu.CompilerParams(
            # no cross-tile state anymore -> class tiles shard across TCs (v7x)
            dimension_semantics=("parallel",),
            vmem_limit_bytes=vmem_limit,
        ),
        cost_estimate=cost,
    )(pooled_b, fhat_b, w_lin_p, b_lin_p, w_arc_p)

    return logits_p[:B, :nc], arc_p[:B, :nc]


def resnest269_head(feat_nchw, params):
    """feat_nchw: (B, C, H, W) backbone feature map (C == 2048).
    Returns (logits, arc_cosine), each (B, num_classes) — matching
    Resnest269.forward's (x, arc) tuple."""
    return _head_forward(feat_nchw, params["w_lin"], params["b_lin"],
                         params["w_arc"], nc=params["nc"], tn=params["tn"])


def _init_params(key, num_classes=4, in_features=2048):
    """Deterministic synthetic parameters matching the module's shapes."""
    k_lin_w, k_lin_b, k_arc = jax.random.split(key, 3)
    bound = 1.0 / math.sqrt(in_features)       # nn.Linear default init bound
    w_lin = jax.random.uniform(k_lin_w, (num_classes, in_features),
                               jnp.float32, -bound, bound)
    b_lin = jax.random.uniform(k_lin_b, (num_classes,),
                               jnp.float32, -bound, bound)
    stdv = 1.0 / math.sqrt(in_features)        # ArcMarginProduct.reset_parameters
    w_arc = jax.random.uniform(k_arc, (num_classes, in_features),
                               jnp.float32, -stdv, stdv)
    return w_lin, b_lin, w_arc


def _reference(feat_nchw, w_lin, b_lin, w_arc):
    """Plain-JAX f32 reference of the same head, for a sanity check."""
    pooled = jnp.mean(feat_nchw, axis=(2, 3))                     # (B, C)
    logits = pooled @ w_lin.T + b_lin
    f_hat = pooled / jnp.maximum(
        jnp.linalg.norm(pooled, axis=1, keepdims=True), 1e-12)
    w_hat = w_arc / jnp.maximum(
        jnp.linalg.norm(w_arc, axis=1, keepdims=True), 1e-12)
    return logits, f_hat @ w_hat.T


if __name__ == "__main__":
    key = jax.random.PRNGKey(0)
    k_feat, k_params = jax.random.split(key)

    # Backbone output: small spatial, C fixed at 2048 by the module.
    B, C, H, W = 2, 2048, 4, 4
    num_classes = 4

    feat = jax.random.normal(k_feat, (B, C, H, W), jnp.float32)
    w_lin, b_lin, w_arc = _init_params(k_params, num_classes, C)

    params = prepare_head_params(w_lin, b_lin, w_arc, block_nc=1024)
    logits, arc = resnest269_head(feat, params)
    logits, arc = jax.block_until_ready((logits, arc))

    ref_logits, ref_arc = _reference(feat, w_lin, b_lin, w_arc)
    # bf16 weight/activation stream => ~1e-3-level deltas vs the pure-f32 reference.
    assert jnp.allclose(logits, ref_logits, atol=2e-2, rtol=2e-2), \
        float(jnp.max(jnp.abs(logits - ref_logits)))
    assert jnp.allclose(arc, ref_arc, atol=2e-2, rtol=2e-2), \
        float(jnp.max(jnp.abs(arc - ref_arc)))

    print("KERNEL_OK")
</pallas_src>

<mosaic_0001>
module attributes {stable_mosaic.version = 11 : i64} {
  func.func @_head_kernel(%arg0: i32, %arg1: memref<8x2048xbf16, #tpu.memory_space<vmem>>, %arg2: memref<8x2048xbf16, #tpu.memory_space<vmem>>, %arg3: memref<128x2048xbf16, #tpu.memory_space<vmem>>, %arg4: memref<1x128xf32, #tpu.memory_space<vmem>>, %arg5: memref<128x2048xbf16, #tpu.memory_space<vmem>>, %arg6: memref<8x128xf32, #tpu.memory_space<vmem>>, %arg7: memref<8x128xf32, #tpu.memory_space<vmem>>) attributes {dimension_semantics = [#tpu.dimension_semantics<parallel>], iteration_bounds = array<i64: 1>, scalar_prefetch = 0 : i64, scratch_operands = 0 : i64, tpu.core_type = #tpu.core_type<tc>, window_params = [{pipeline_mode = #tpu.pipeline_mode<synchronous>, transform_indices = @transform_0, window_bounds = array<i64: 8, 2048>}, {pipeline_mode = #tpu.pipeline_mode<synchronous>, transform_indices = @transform_1, window_bounds = array<i64: 8, 2048>}, {transform_indices = @transform_2, window_bounds = array<i64: 128, 2048>}, {transform_indices = @transform_3, window_bounds = array<i64: 1, 128>}, {transform_indices = @transform_4, window_bounds = array<i64: 128, 2048>}, {transform_indices = @transform_5, window_bounds = array<i64: 8, 128>}, {transform_indices = @transform_6, window_bounds = array<i64: 8, 128>}]} {
    %c0 = arith.constant 0 : index
    %c0_0 = arith.constant 0 : index
    %0 = vector.load %arg1[%c0, %c0_0] : memref<8x2048xbf16, #tpu.memory_space<vmem>>, vector<8x2048xbf16>
    %c0_1 = arith.constant 0 : index
    %c0_2 = arith.constant 0 : index
    %1 = vector.load %arg3[%c0_1, %c0_2] : memref<128x2048xbf16, #tpu.memory_space<vmem>>, vector<128x2048xbf16>
    %cst = arith.constant dense<0.000000e+00> : vector<8x128xf32>
    %2 = tpu.matmul %0, %1, %cst {dimension_numbers = #tpu.dot_dimension_numbers<[1], [1], [0], [0], [0, 0, 1, 0], [], []>} : vector<8x2048xbf16>, vector<128x2048xbf16>, vector<8x128xf32> -> vector<8x128xf32>
    %c0_3 = arith.constant 0 : index
    %c0_4 = arith.constant 0 : index
    %3 = vector.load %arg4[%c0_3, %c0_4] : memref<1x128xf32, #tpu.memory_space<vmem>>, vector<1x128xf32>
    %4 = vector.broadcast %3 : vector<1x128xf32> to vector<8x128xf32>
    %5 = arith.addf %2, %4 : vector<8x128xf32>
    %c0_5 = arith.constant 0 : index
    %c0_6 = arith.constant 0 : index
    %6 = vector.load %arg6[%c0_5, %c0_6] : memref<8x128xf32, #tpu.memory_space<vmem>>, vector<8x128xf32>
    tpu.vector_store %arg6[%c0_5, %c0_6], %5 {strides = array<i32>} : memref<8x128xf32, #tpu.memory_space<vmem>>, vector<8x128xf32>,
    %c0_7 = arith.constant 0 : index
    %c0_8 = arith.constant 0 : index
    %7 = vector.load %arg2[%c0_7, %c0_8] : memref<8x2048xbf16, #tpu.memory_space<vmem>>, vector<8x2048xbf16>
    %c0_9 = arith.constant 0 : index
    %c0_10 = arith.constant 0 : index
    %8 = vector.load %arg5[%c0_9, %c0_10] : memref<128x2048xbf16, #tpu.memory_space<vmem>>, vector<128x2048xbf16>
    %cst_11 = arith.constant dense<0.000000e+00> : vector<8x128xf32>
    %9 = tpu.matmul %7, %8, %cst_11 {dimension_numbers = #tpu.dot_dimension_numbers<[1], [1], [0], [0], [0, 0, 1, 0], [], []>} : vector<8x2048xbf16>, vector<128x2048xbf16>, vector<8x128xf32> -> vector<8x128xf32>
    %c0_12 = arith.constant 0 : index
    %c0_13 = arith.constant 0 : index
    %10 = vector.load %arg7[%c0_12, %c0_13] : memref<8x128xf32, #tpu.memory_space<vmem>>, vector<8x128xf32>
    tpu.vector_store %arg7[%c0_12, %c0_13], %9 {strides = array<i32>} : memref<8x128xf32, #tpu.memory_space<vmem>>, vector<8x128xf32>,
    return
  }
  func.func @transform_0(%arg0: i32) -> (i32, i32) {
    %c0_i32 = arith.constant 0 : i32
    %c0_i32_0 = arith.constant 0 : i32
    %c0_i32_1 = arith.constant 0 : i32
    return %c0_i32, %c0_i32_0 : i32, i32
  }
  func.func @transform_1(%arg0: i32) -> (i32, i32) {
    %c0_i32 = arith.constant 0 : i32
    %c0_i32_0 = arith.constant 0 : i32
    %c0_i32_1 = arith.constant 0 : i32
    return %c0_i32, %c0_i32_0 : i32, i32
  }
  func.func @transform_2(%arg0: i32) -> (i32, i32) {
    %c0_i32 = arith.constant 0 : i32
    %c0_i32_0 = arith.constant 0 : i32
    return %arg0, %c0_i32 : i32, i32
  }
  func.func @transform_3(%arg0: i32) -> (i32, i32) {
    %c0_i32 = arith.constant 0 : i32
    %c0_i32_0 = arith.constant 0 : i32
    return %c0_i32, %arg0 : i32, i32
  }
  func.func @transform_4(%arg0: i32) -> (i32, i32) {
    %c0_i32 = arith.constant 0 : i32
    %c0_i32_0 = arith.constant 0 : i32
    return %arg0, %c0_i32 : i32, i32
  }
  func.func @transform_5(%arg0: i32) -> (i32, i32) {
    %c0_i32 = arith.constant 0 : i32
    %c0_i32_0 = arith.constant 0 : i32
    return %c0_i32, %arg0 : i32, i32
  }
  func.func @transform_6(%arg0: i32) -> (i32, i32) {
    %c0_i32 = arith.constant 0 : i32
    %c0_i32_0 = arith.constant 0 : i32
    return %c0_i32, %arg0 : i32, i32
  }
}

</mosaic_0001>

<llo_original>
// kernel: _head_forward.1
$region0: #{_head_forward.1}
  #allocation0 [shape = 'u32[]', space=smem, size = 0x4, offset = 0x4, fixed_abs, tag = 'smem constant byte address 0x4 - core index']
  #allocation1 [shape = 'u32[144,128]{1,0:T(1,128)}', space=vmem, size = 0x12000, scoped, tag = 'internal scratch']
  %s0 = inlined_call_operand.vmem [shape: bf16[8,2048], index: 0, kind: input, shape index: {}]
  %s1 = inlined_call_operand.vmem [shape: bf16[8,2048], index: 1, kind: input, shape index: {}]
  %s2 = inlined_call_operand.hbm [shape: bf16[128,2048], index: 2, kind: input, shape index: {}]
  %s3 = inlined_call_operand.vmem [shape: f32[1,128], index: 3, kind: input, shape index: {}]
  %s4 = inlined_call_operand.hbm [shape: bf16[128,2048], index: 4, kind: input, shape index: {}]
  %s5 = inlined_call_operand.vmem [shape: f32[8,128], index: 5, kind: output, shape index: {0}]
  %s6 = inlined_call_operand.vmem [shape: f32[8,128], index: 6, kind: output, shape index: {1}]
  %7 = xla_tuple %s5, %s6
  %s8 = sld [smem:[#allocation0]]
  $region46: #{_head_forward.1} parent=0
    _
  %s10 = ssub.s32 1, %s8
  %s11 = scalar_select 0, %s10, %s8
  $region1: #{_head_forward.1} parent=0
    #allocation2 [shape = 'u8[524288]{0}', space=vmem, size = 0x80000, scoped, tag = 'input window, operand 2, single buffered']
    #allocation3 [shape = 's32[1]{0}', space=sflag, size = 0x4, scoped, tag = 'scoped memory for _head_forward.1']
    #allocation4 [shape = 'u8[524288]{0}', space=vmem, size = 0x80000, scoped, tag = 'input window, operand 4, single buffered']
    #allocation5 [shape = 's32[1]{0}', space=sflag, size = 0x4, scoped, tag = 'scoped memory for _head_forward.1']
    %12 = vsyncpa [#allocation3], 0
    %13 = vsyncpa [#allocation5], 0
    // Predicated region
    $region2: #{_head_forward.1} parent=1 // pred_check
      _
    $region3: #{_head_forward.1} parent=1 // pred_check_branch
      %15 = sbr.rel (0) target = $region5
    $region4: #{_head_forward.1} parent=1 // pred_region
      _
    $region5: #{_head_forward.1} parent=1 // pred_fallthru
      _
    // Predicated region
    $region6: #{_head_forward.1} parent=1 // pred_check
      _
    $region7: #{_head_forward.1} parent=1 // pred_check_branch
      %17 = sbr.rel (0) target = $region9
    $region8: #{_head_forward.1} parent=1 // pred_region
      _
    $region9: #{_head_forward.1} parent=1 // pred_fallthru
      _
    // Predicated region
    $region10: #{_head_forward.1} parent=1 // pred_check
      _
    $region11: #{_head_forward.1} parent=1 // pred_check_branch
      %19 = sbr.rel (0) target = $region13
    $region12: #{_head_forward.1} parent=1 // pred_region
      %s21 = ssub.s32 16384, 16384
      %22 = vsyncadd [#allocation3], %s21
      %s23 = sshll.u32 [#allocation2], 4
      %s24 = int_to_ptr.vmem [resolvable:$true] %s23
      %29 = dma.hbm_to_vmem [thread:$0]  %s2, 16384, %s24, [#allocation3], 1024, 1024, 64
    $region13: #{_head_forward.1} parent=1 // pred_fallthru
      _
    // Predicated region
    $region14: #{_head_forward.1} parent=1 // pred_check
      _
    $region15: #{_head_forward.1} parent=1 // pred_check_branch
      %31 = sbr.rel (0) target = $region17
    $region16: #{_head_forward.1} parent=1 // pred_region
      _
    $region17: #{_head_forward.1} parent=1 // pred_fallthru
      _
    // Predicated region
    $region18: #{_head_forward.1} parent=1 // pred_check
      _
    $region19: #{_head_forward.1} parent=1 // pred_check_branch
      %33 = sbr.rel (0) target = $region21
    $region20: #{_head_forward.1} parent=1 // pred_region
      %s35 = ssub.s32 16384, 16384
      %36 = vsyncadd [#allocation5], %s35
      %s37 = sshll.u32 [#allocation4], 4
      %s38 = int_to_ptr.vmem [resolvable:$true] %s37
      %43 = dma.hbm_to_vmem [thread:$0]  %s4, 16384, %s38, [#allocation5], 1024, 1024, 64
    $region21: #{_head_forward.1} parent=1 // pred_fallthru
      _
    // Predicated region
    $region22: #{_head_forward.1} parent=1 // pred_check
      _
    $region23: #{_head_forward.1} parent=1 // pred_check_branch
      %45 = sbr.rel (0) target = $region25
    $region24: #{_head_forward.1} parent=1 // pred_region
      %46 = dma.done [#allocation3], 16384
    $region25: #{_head_forward.1} parent=1 // pred_fallthru
      _
    // Predicated region
    $region26: #{_head_forward.1} parent=1 // pred_check
      _
    $region27: #{_head_forward.1} parent=1 // pred_check_branch
      %48 = sbr.rel (0) target = $region29
    $region28: #{_head_forward.1} parent=1 // pred_region
      %49 = dma.done [#allocation5], 16384
    $region29: #{_head_forward.1} parent=1 // pred_fallthru
      _
    %v51 = vld [vmem:[%s0] sm:$0xff]
    %v52 = vld [vmem:[%s0 + $0x8] sm:$0xff]
    %v53 = vld [vmem:[%s0 + $0x10] sm:$0xff]
    %v54 = vld [vmem:[%s0 + $0x18] sm:$0xff]
    %v55 = vld [vmem:[%s0 + $0x20] sm:$0xff]
    %v56 = vld [vmem:[%s0 + $0x28] sm:$0xff]
    %v57 = vld [vmem:[%s0 + $0x30] sm:$0xff]
    %v58 = vld [vmem:[%s0 + $0x38] sm:$0xff]
    %v59 = vld [vmem:[#allocation2] sm:$0xff]
    %v60 = vld [vmem:[#allocation2 + $0x8] sm:$0xff]
    %v61 = vld [vmem:[#allocation2 + $0x10] sm:$0xff]
    %v62 = vld [vmem:[#allocation2 + $0x18] sm:$0xff]
    %v63 = vld [vmem:[#allocation2 + $0x20] sm:$0xff]
    %v64 = vld [vmem:[#allocation2 + $0x28] sm:$0xff]
    %v65 = vld [vmem:[#allocation2 + $0x30] sm:$0xff]
    %v66 = vld [vmem:[#allocation2 + $0x38] sm:$0xff]
    %v67 = vld [vmem:[#allocation2 + $0x40] sm:$0xff]
    %v68 = vld [vmem:[#allocation2 + $0x48] sm:$0xff]
    %v69 = vld [vmem:[#allocation2 + $0x50] sm:$0xff]
    %v70 = vld [vmem:[#allocation2 + $0x58] sm:$0xff]
    %v71 = vld [vmem:[#allocation2 + $0x60] sm:$0xff]
    %v72 = vld [vmem:[#allocation2 + $0x68] sm:$0xff]
    %v73 = vld [vmem:[#allocation2 + $0x70] sm:$0xff]
    %v74 = vld [vmem:[#allocation2 + $0x78] sm:$0xff]
    %v75 = vld [vmem:[#allocation2 + $0x80] sm:$0xff]
    %v76 = vld [vmem:[#allocation2 + $0x88] sm:$0xff]
    %v77 = vld [vmem:[#allocation2 + $0x90] sm:$0xff]
    %v78 = vld [vmem:[#allocation2 + $0x98] sm:$0xff]
    %v79 = vld [vmem:[#allocation2 + $0xa0] sm:$0xff]
    %v80 = vld [vmem:[#allocation2 + $0xa8] sm:$0xff]
    %v81 = vld [vmem:[#allocation2 + $0xb0] sm:$0xff]
    %v82 = vld [vmem:[#allocation2 + $0xb8] sm:$0xff]
    %v83 = vld [vmem:[#allocation2 + $0xc0] sm:$0xff]
    %v84 = vld [vmem:[#allocation2 + $0xc8] sm:$0xff]
    %v85 = vld [vmem:[#allocation2 + $0xd0] sm:$0xff]
    %v86 = vld [vmem:[#allocation2 + $0xd8] sm:$0xff]
    %v87 = vld [vmem:[#allocation2 + $0xe0] sm:$0xff]
    %v88 = vld [vmem:[#allocation2 + $0xe8] sm:$0xff]
    %v89 = vld [vmem:[#allocation2 + $0xf0] sm:$0xff]
    %v90 = vld [vmem:[#allocation2 + $0xf8] sm:$0xff]
    %v91 = vld [vmem:[#allocation2 + $0x100] sm:$0xff]
    %v92 = vld [vmem:[#allocation2 + $0x108] sm:$0xff]
    %v93 = vld [vmem:[#allocation2 + $0x110] sm:$0xff]
    %v94 = vld [vmem:[#allocation2 + $0x118] sm:$0xff]
    %v95 = vld [vmem:[#allocation2 + $0x120] sm:$0xff]
    %v96 = vld [vmem:[#allocation2 + $0x128] sm:$0xff]
    %v97 = vld [vmem:[#allocation2 + $0x130] sm:$0xff]
    %v98 = vld [vmem:[#allocation2 + $0x138] sm:$0xff]
    %v99 = vld [vmem:[#allocation2 + $0x140] sm:$0xff]
    %v100 = vld [vmem:[#allocation2 + $0x148] sm:$0xff]
    %v101 = vld [vmem:[#allocation2 + $0x150] sm:$0xff]
    %v102 = vld [vmem:[#allocation2 + $0x158] sm:$0xff]
    %v103 = vld [vmem:[#allocation2 + $0x160] sm:$0xff]
    %v104 = vld [vmem:[#allocation2 + $0x168] sm:$0xff]
    %v105 = vld [vmem:[#allocation2 + $0x170] sm:$0xff]
    %v106 = vld [vmem:[#allocation2 + $0x178] sm:$0xff]
    %v107 = vld [vmem:[#allocation2 + $0x180] sm:$0xff]
    %v108 = vld [vmem:[#allocation2 + $0x188] sm:$0xff]
    %v109 = vld [vmem:[#allocation2 + $0x190] sm:$0xff]
    %v110 = vld [vmem:[#allocation2 + $0x198] sm:$0xff]
    %v111 = vld [vmem:[#allocation2 + $0x1a0] sm:$0xff]
    %v112 = vld [vmem:[#allocation2 + $0x1a8] sm:$0xff]
    %v113 = vld [vmem:[#allocation2 + $0x1b0] sm:$0xff]
    %v114 = vld [vmem:[#allocation2 + $0x1b8] sm:$0xff]
    %v115 = vld [vmem:[#allocation2 + $0x1c0] sm:$0xff]
    %v116 = vld [vmem:[#allocation2 + $0x1c8] sm:$0xff]
    %v117 = vld [vmem:[#allocation2 + $0x1d0] sm:$0xff]
    %v118 = vld [vmem:[#allocation2 + $0x1d8] sm:$0xff]
    %v119 = vld [vmem:[#allocation2 + $0x1e0] sm:$0xff]
    %v120 = vld [vmem:[#allocation2 + $0x1e8] sm:$0xff]
    %v121 = vld [vmem:[#allocation2 + $0x1f0] sm:$0xff]
    %v122 = vld [vmem:[#allocation2 + $0x1f8] sm:$0xff]
    %v123 = vld [vmem:[#allocation2 + $0x200] sm:$0xff]
    %v124 = vld [vmem:[#allocation2 + $0x208] sm:$0xff]
    %v125 = vld [vmem:[#allocation2 + $0x210] sm:$0xff]
    %v126 = vld [vmem:[#allocation2 + $0x218] sm:$0xff]
    %v127 = vld [vmem:[#allocation2 + $0x220] sm:$0xff]
    %v128 = vld [vmem:[#allocation2 + $0x228] sm:$0xff]
    %v129 = vld [vmem:[#allocation2 + $0x230] sm:$0xff]
    %v130 = vld [vmem:[#allocation2 + $0x238] sm:$0xff]
    %v131 = vld [vmem:[#allocation2 + $0x240] sm:$0xff]
    %v132 = vld [vmem:[#allocation2 + $0x248] sm:$0xff]
    %v133 = vld [vmem:[#allocation2 + $0x250] sm:$0xff]
    %v134 = vld [vmem:[#allocation2 + $0x258] sm:$0xff]
    %v135 = vld [vmem:[#allocation2 + $0x260] sm:$0xff]
    %v136 = vld [vmem:[#allocation2 + $0x268] sm:$0xff]
    %v137 = vld [vmem:[#allocation2 + $0x270] sm:$0xff]
    %v138 = vld [vmem:[#allocation2 + $0x278] sm:$0xff]
    %v139 = vld [vmem:[#allocation2 + $0x280] sm:$0xff]
    %v140 = vld [vmem:[#allocation2 + $0x288] sm:$0xff]
    %v141 = vld [vmem:[#allocation2 + $0x290] sm:$0xff]
    %v142 = vld [vmem:[#allocation2 + $0x298] sm:$0xff]
    %v143 = vld [vmem:[#allocation2 + $0x2a0] sm:$0xff]
    %v144 = vld [vmem:[#allocation2 + $0x2a8] sm:$0xff]
    %v145 = vld [vmem:[#allocation2 + $0x2b0] sm:$0xff]
    %v146 = vld [vmem:[#allocation2 + $0x2b8] sm:$0xff]
    %v147 = vld [vmem:[#allocation2 + $0x2c0] sm:$0xff]
    %v148 = vld [vmem:[#allocation2 + $0x2c8] sm:$0xff]
    %v149 = vld [vmem:[#allocation2 + $0x2d0] sm:$0xff]
    %v150 = vld [vmem:[#allocation2 + $0x2d8] sm:$0xff]
    %v151 = vld [vmem:[#allocation2 + $0x2e0] sm:$0xff]
    %v152 = vld [vmem:[#allocation2 + $0x2e8] sm:$0xff]
    %v153 = vld [vmem:[#allocation2 + $0x2f0] sm:$0xff]
    %v154 = vld [vmem:[#allocation2 + $0x2f8] sm:$0xff]
    %v155 = vld [vmem:[#allocation2 + $0x300] sm:$0xff]
    %v156 = vld [vmem:[#allocation2 + $0x308] sm:$0xff]
    %v157 = vld [vmem:[#allocation2 + $0x310] sm:$0xff]
    %v158 = vld [vmem:[#allocation2 + $0x318] sm:$0xff]
    %v159 = vld [vmem:[#allocation2 + $0x320] sm:$0xff]
    %v160 = vld [vmem:[#allocation2 + $0x328] sm:$0xff]
    %v161 = vld [vmem:[#allocation2 + $0x330] sm:$0xff]
    %v162 = vld [vmem:[#allocation2 + $0x338] sm:$0xff]
    %v163 = vld [vmem:[#allocation2 + $0x340] sm:$0xff]
    %v164 = vld [vmem:[#allocation2 + $0x348] sm:$0xff]
    %v165 = vld [vmem:[#allocation2 + $0x350] sm:$0xff]
    %v166 = vld [vmem:[#allocation2 + $0x358] sm:$0xff]
    %v167 = vld [vmem:[#allocation2 + $0x360] sm:$0xff]
    %v168 = vld [vmem:[#allocation2 + $0x368] sm:$0xff]
    %v169 = vld [vmem:[#allocation2 + $0x370] sm:$0xff]
    %v170 = vld [vmem:[#allocation2 + $0x378] sm:$0xff]
    %v171 = vld [vmem:[#allocation2 + $0x380] sm:$0xff]
    %v172 = vld [vmem:[#allocation2 + $0x388] sm:$0xff]
    %v173 = vld [vmem:[#allocation2 + $0x390] sm:$0xff]
    %v174 = vld [vmem:[#allocation2 + $0x398] sm:$0xff]
    %v175 = vld [vmem:[#allocation2 + $0x3a0] sm:$0xff]
    %v176 = vld [vmem:[#allocation2 + $0x3a8] sm:$0xff]
    %v177 = vld [vmem:[#allocation2 + $0x3b0] sm:$0xff]
    %v178 = vld [vmem:[#allocation2 + $0x3b8] sm:$0xff]
    %v179 = vld [vmem:[#allocation2 + $0x3c0] sm:$0xff]
    %v180 = vld [vmem:[#allocation2 + $0x3c8] sm:$0xff]
    %v181 = vld [vmem:[#allocation2 + $0x3d0] sm:$0xff]
    %v182 = vld [vmem:[#allocation2 + $0x3d8] sm:$0xff]
    %v183 = vld [vmem:[#allocation2 + $0x3e0] sm:$0xff]
    %v184 = vld [vmem:[#allocation2 + $0x3e8] sm:$0xff]
    %v185 = vld [vmem:[#allocation2 + $0x3f0] sm:$0xff]
    %v186 = vld [vmem:[#allocation2 + $0x3f8] sm:$0xff]
    %v187 = vld [vmem:[%s3] sm:$0x1]
    %v189 = vlaneseq
    %v190 = vshrl.u32 %v189, 7
    %v191 = vsub.s32 0, %v190
    %v192 = vrot.slane %v187, %v191
    %v202 = vunpack.c.l.b16 %v51
    %v203 = vunpack.c.h.b16 %v51
    %v204 = vunpack.c.l.b16 %v52
    %v205 = vunpack.c.h.b16 %v52
    %v206 = vunpack.c.l.b16 %v53
    %v207 = vunpack.c.h.b16 %v53
    %v208 = vunpack.c.l.b16 %v54
    %v209 = vunpack.c.h.b16 %v54
    %v210 = vunpack.c.l.b16 %v55
    %v211 = vunpack.c.h.b16 %v55
    %v212 = vunpack.c.l.b16 %v56
    %v213 = vunpack.c.h.b16 %v56
    %v214 = vunpack.c.l.b16 %v57
    %v215 = vunpack.c.h.b16 %v57
    %v216 = vunpack.c.l.b16 %v58
    %v217 = vunpack.c.h.b16 %v58
    %v218 = vpack.c.b16 %v202, %v202
    %v219 = vpack.c.b16 %v203, %v203
    %v220 = vpack.c.b16 %v204, %v204
    %v221 = vpack.c.b16 %v205, %v205
    %v222 = vpack.c.b16 %v206, %v206
    %v223 = vpack.c.b16 %v207, %v207
    %v224 = vpack.c.b16 %v208, %v208
    %v225 = vpack.c.b16 %v209, %v209
    %v226 = vpack.c.b16 %v210, %v210
    %v227 = vpack.c.b16 %v211, %v211
    %v228 = vpack.c.b16 %v212, %v212
    %v229 = vpack.c.b16 %v213, %v213
    %v230 = vpack.c.b16 %v214, %v214
    %v231 = vpack.c.b16 %v215, %v215
    %v232 = vpack.c.b16 %v216, %v216
    %v233 = vpack.c.b16 %v217, %v217
    %v378 = vunpack.c.l.b16 %v59
    %v379 = vunpack.c.h.b16 %v59
    %v380 = vunpack.c.l.b16 %v60
    %v381 = vunpack.c.h.b16 %v60
    %v382 = vunpack.c.l.b16 %v61
    %v383 = vunpack.c.h.b16 %v61
    %v384 = vunpack.c.l.b16 %v62
    %v385 = vunpack.c.h.b16 %v62
    %v386 = vunpack.c.l.b16 %v63
    %v387 = vunpack.c.h.b16 %v63
    %v388 = vunpack.c.l.b16 %v64
    %v389 = vunpack.c.h.b16 %v64
    %v390 = vunpack.c.l.b16 %v65
    %v391 = vunpack.c.h.b16 %v65
    %v392 = vunpack.c.l.b16 %v66
    %v393 = vunpack.c.h.b16 %v66
    %v394 = vunpack.c.l.b16 %v67
    %v395 = vunpack.c.h.b16 %v67
    %v396 = vunpack.c.l.b16 %v68
    %v397 = vunpack.c.h.b16 %v68
    %v398 = vunpack.c.l.b16 %v69
    %v399 = vunpack.c.h.b16 %v69
    %v400 = vunpack.c.l.b16 %v70
    %v401 = vunpack.c.h.b16 %v70
    %v402 = vunpack.c.l.b16 %v71
    %v403 = vunpack.c.h.b16 %v71
    %v404 = vunpack.c.l.b16 %v72
    %v405 = vunpack.c.h.b16 %v72
    %v406 = vunpack.c.l.b16 %v73
    %v407 = vunpack.c.h.b16 %v73
    %v408 = vunpack.c.l.b16 %v74
    %v409 = vunpack.c.h.b16 %v74
    %v410 = vunpack.c.l.b16 %v75
    %v411 = vunpack.c.h.b16 %v75
    %v412 = vunpack.c.l.b16 %v76
    %v413 = vunpack.c.h.b16 %v76
    %v414 = vunpack.c.l.b16 %v77
    %v415 = vunpack.c.h.b16 %v77
    %v416 = vunpack.c.l.b16 %v78
    %v417 = vunpack.c.h.b16 %v78
    %v418 = vunpack.c.l.b16 %v79
    %v419 = vunpack.c.h.b16 %v79
    %v420 = vunpack.c.l.b16 %v80
    %v421 = vunpack.c.h.b16 %v80
    %v422 = vunpack.c.l.b16 %v81
    %v423 = vunpack.c.h.b16 %v81
    %v424 = vunpack.c.l.b16 %v82
    %v425 = vunpack.c.h.b16 %v82
    %v426 = vunpack.c.l.b16 %v83
    %v427 = vunpack.c.h.b16 %v83
    %v428 = vunpack.c.l.b16 %v84
    %v429 = vunpack.c.h.b16 %v84
    %v430 = vunpack.c.l.b16 %v85
    %v431 = vunpack.c.h.b16 %v85
    %v432 = vunpack.c.l.b16 %v86
    %v433 = vunpack.c.h.b16 %v86
    %v434 = vunpack.c.l.b16 %v87
    %v435 = vunpack.c.h.b16 %v87
    %v436 = vunpack.c.l.b16 %v88
    %v437 = vunpack.c.h.b16 %v88
    %v438 = vunpack.c.l.b16 %v89
    %v439 = vunpack.c.h.b16 %v89
    %v440 = vunpack.c.l.b16 %v90
    %v441 = vunpack.c.h.b16 %v90
    %v442 = vunpack.c.l.b16 %v91
    %v443 = vunpack.c.h.b16 %v91
    %v444 = vunpack.c.l.b16 %v92
    %v445 = vunpack.c.h.b16 %v92
    %v446 = vunpack.c.l.b16 %v93
    %v447 = vunpack.c.h.b16 %v93
    %v448 = vunpack.c.l.b16 %v94
    %v449 = vunpack.c.h.b16 %v94
    %v450 = vunpack.c.l.b16 %v95
    %v451 = vunpack.c.h.b16 %v95
    %v452 = vunpack.c.l.b16 %v96
    %v453 = vunpack.c.h.b16 %v96
    %v454 = vunpack.c.l.b16 %v97
    %v455 = vunpack.c.h.b16 %v97
    %v456 = vunpack.c.l.b16 %v98
    %v457 = vunpack.c.h.b16 %v98
    %v458 = vunpack.c.l.b16 %v99
    %v459 = vunpack.c.h.b16 %v99
    %v460 = vunpack.c.l.b16 %v100
    %v461 = vunpack.c.h.b16 %v100
    %v462 = vunpack.c.l.b16 %v101
    %v463 = vunpack.c.h.b16 %v101
    %v464 = vunpack.c.l.b16 %v102
    %v465 = vunpack.c.h.b16 %v102
    %v466 = vunpack.c.l.b16 %v103
    %v467 = vunpack.c.h.b16 %v103
    %v468 = vunpack.c.l.b16 %v104
    %v469 = vunpack.c.h.b16 %v104
    %v470 = vunpack.c.l.b16 %v105
    %v471 = vunpack.c.h.b16 %v105
    %v472 = vunpack.c.l.b16 %v106
    %v473 = vunpack.c.h.b16 %v106
    %v474 = vunpack.c.l.b16 %v107
    %v475 = vunpack.c.h.b16 %v107
    %v476 = vunpack.c.l.b16 %v108
    %v477 = vunpack.c.h.b16 %v108
    %v478 = vunpack.c.l.b16 %v109
    %v479 = vunpack.c.h.b16 %v109
    %v480 = vunpack.c.l.b16 %v110
    %v481 = vunpack.c.h.b16 %v110
    %v482 = vunpack.c.l.b16 %v111
    %v483 = vunpack.c.h.b16 %v111
    %v484 = vunpack.c.l.b16 %v112
    %v485 = vunpack.c.h.b16 %v112
    %v486 = vunpack.c.l.b16 %v113
    %v487 = vunpack.c.h.b16 %v113
    %v488 = vunpack.c.l.b16 %v114
    %v489 = vunpack.c.h.b16 %v114
    %v490 = vunpack.c.l.b16 %v115
    %v491 = vunpack.c.h.b16 %v115
    %v492 = vunpack.c.l.b16 %v116
    %v493 = vunpack.c.h.b16 %v116
    %v494 = vunpack.c.l.b16 %v117
    %v495 = vunpack.c.h.b16 %v117
    %v496 = vunpack.c.l.b16 %v118
    %v497 = vunpack.c.h.b16 %v118
    %v498 = vunpack.c.l.b16 %v119
    %v499 = vunpack.c.h.b16 %v119
    %v500 = vunpack.c.l.b16 %v120
    %v501 = vunpack.c.h.b16 %v120
    %v502 = vunpack.c.l.b16 %v121
    %v503 = vunpack.c.h.b16 %v121
    %v504 = vunpack.c.l.b16 %v122
    %v505 = vunpack.c.h.b16 %v122
    %v506 = vunpack.c.l.b16 %v123
    %v507 = vunpack.c.h.b16 %v123
    %v508 = vunpack.c.l.b16 %v124
    %v509 = vunpack.c.h.b16 %v124
    %v510 = vunpack.c.l.b16 %v125
    %v511 = vunpack.c.h.b16 %v125
    %v512 = vunpack.c.l.b16 %v126
    %v513 = vunpack.c.h.b16 %v126
    %v514 = vunpack.c.l.b16 %v127
    %v515 = vunpack.c.h.b16 %v127
    %v516 = vunpack.c.l.b16 %v128
    %v517 = vunpack.c.h.b16 %v128
    %v518 = vunpack.c.l.b16 %v129
    %v519 = vunpack.c.h.b16 %v129
    %v520 = vunpack.c.l.b16 %v130
    %v521 = vunpack.c.h.b16 %v130
    %v522 = vunpack.c.l.b16 %v131
    %v523 = vunpack.c.h.b16 %v131
    %v524 = vunpack.c.l.b16 %v132
    %v525 = vunpack.c.h.b16 %v132
    %v526 = vunpack.c.l.b16 %v133
    %v527 = vunpack.c.h.b16 %v133
    %v528 = vunpack.c.l.b16 %v134
    %v529 = vunpack.c.h.b16 %v134
    %v530 = vunpack.c.l.b16 %v135
    %v531 = vunpack.c.h.b16 %v135
    %v532 = vunpack.c.l.b16 %v136
    %v533 = vunpack.c.h.b16 %v136
    %v534 = vunpack.c.l.b16 %v137
    %v535 = vunpack.c.h.b16 %v137
    %v536 = vunpack.c.l.b16 %v138
    %v537 = vunpack.c.h.b16 %v138
    %v538 = vunpack.c.l.b16 %v139
    %v539 = vunpack.c.h.b16 %v139
    %v540 = vunpack.c.l.b16 %v140
    %v541 = vunpack.c.h.b16 %v140
    %v542 = vunpack.c.l.b16 %v141
    %v543 = vunpack.c.h.b16 %v141
    %v544 = vunpack.c.l.b16 %v142
    %v545 = vunpack.c.h.b16 %v142
    %v546 = vunpack.c.l.b16 %v143
    %v547 = vunpack.c.h.b16 %v143
    %v548 = vunpack.c.l.b16 %v144
    %v549 = vunpack.c.h.b16 %v144
    %v550 = vunpack.c.l.b16 %v145
    %v551 = vunpack.c.h.b16 %v145
    %v552 = vunpack.c.l.b16 %v146
    %v553 = vunpack.c.h.b16 %v146
    %v554 = vunpack.c.l.b16 %v147
    %v555 = vunpack.c.h.b16 %v147
    %v556 = vunpack.c.l.b16 %v148
    %v557 = vunpack.c.h.b16 %v148
    %v558 = vunpack.c.l.b16 %v149
    %v559 = vunpack.c.h.b16 %v149
    %v560 = vunpack.c.l.b16 %v150
    %v561 = vunpack.c.h.b16 %v150
    %v562 = vunpack.c.l.b16 %v151
    %v563 = vunpack.c.h.b16 %v151
    %v564 = vunpack.c.l.b16 %v152
    %v565 = vunpack.c.h.b16 %v152
    %v566 = vunpack.c.l.b16 %v153
    %v567 = vunpack.c.h.b16 %v153
    %v568 = vunpack.c.l.b16 %v154
    %v569 = vunpack.c.h.b16 %v154
    %v570 = vunpack.c.l.b16 %v155
    %v571 = vunpack.c.h.b16 %v155
    %v572 = vunpack.c.l.b16 %v156
    %v573 = vunpack.c.h.b16 %v156
    %v574 = vunpack.c.l.b16 %v157
    %v575 = vunpack.c.h.b16 %v157
    %v576 = vunpack.c.l.b16 %v158
    %v577 = vunpack.c.h.b16 %v158
    %v578 = vunpack.c.l.b16 %v159
    %v579 = vunpack.c.h.b16 %v159
    %v580 = vunpack.c.l.b16 %v160
    %v581 = vunpack.c.h.b16 %v160
    %v582 = vunpack.c.l.b16 %v161
    %v583 = vunpack.c.h.b16 %v161
    %v584 = vunpack.c.l.b16 %v162
    %v585 = vunpack.c.h.b16 %v162
    %v586 = vunpack.c.l.b16 %v163
    %v587 = vunpack.c.h.b16 %v163
    %v588 = vunpack.c.l.b16 %v164
    %v589 = vunpack.c.h.b16 %v164
    %v590 = vunpack.c.l.b16 %v165
    %v591 = vunpack.c.h.b16 %v165
    %v592 = vunpack.c.l.b16 %v166
    %v593 = vunpack.c.h.b16 %v166
    %v594 = vunpack.c.l.b16 %v167
    %v595 = vunpack.c.h.b16 %v167
    %v596 = vunpack.c.l.b16 %v168
    %v597 = vunpack.c.h.b16 %v168
    %v598 = vunpack.c.l.b16 %v169
    %v599 = vunpack.c.h.b16 %v169
    %v600 = vunpack.c.l.b16 %v170
    %v601 = vunpack.c.h.b16 %v170
    %v602 = vunpack.c.l.b16 %v171
    %v603 = vunpack.c.h.b16 %v171
    %v604 = vunpack.c.l.b16 %v172
    %v605 = vunpack.c.h.b16 %v172
    %v606 = vunpack.c.l.b16 %v173
    %v607 = vunpack.c.h.b16 %v173
    %v608 = vunpack.c.l.b16 %v174
    %v609 = vunpack.c.h.b16 %v174
    %v610 = vunpack.c.l.b16 %v175
    %v611 = vunpack.c.h.b16 %v175
    %v612 = vunpack.c.l.b16 %v176
    %v613 = vunpack.c.h.b16 %v176
    %v614 = vunpack.c.l.b16 %v177
    %v615 = vunpack.c.h.b16 %v177
    %v616 = vunpack.c.l.b16 %v178
    %v617 = vunpack.c.h.b16 %v178
    %v618 = vunpack.c.l.b16 %v179
    %v619 = vunpack.c.h.b16 %v179
    %v620 = vunpack.c.l.b16 %v180
    %v621 = vunpack.c.h.b16 %v180
    %v622 = vunpack.c.l.b16 %v181
    %v623 = vunpack.c.h.b16 %v181
    %v624 = vunpack.c.l.b16 %v182
    %v625 = vunpack.c.h.b16 %v182
    %v626 = vunpack.c.l.b16 %v183
    %v627 = vunpack.c.h.b16 %v183
    %v628 = vunpack.c.l.b16 %v184
    %v629 = vunpack.c.h.b16 %v184
    %v630 = vunpack.c.l.b16 %v185
    %v631 = vunpack.c.h.b16 %v185
    %v632 = vunpack.c.l.b16 %v186
    %v633 = vunpack.c.h.b16 %v186
    %v634 = vpack.c.b16 %v394, %v378
    %v635 = vpack.c.b16 %v395, %v379
    %v636 = vpack.c.b16 %v396, %v380
    %v637 = vpack.c.b16 %v397, %v381
    %v638 = vpack.c.b16 %v398, %v382
    %v639 = vpack.c.b16 %v399, %v383
    %v640 = vpack.c.b16 %v400, %v384
    %v641 = vpack.c.b16 %v401, %v385
    %v642 = vpack.c.b16 %v402, %v386
    %v643 = vpack.c.b16 %v403, %v387
    %v644 = vpack.c.b16 %v404, %v388
    %v645 = vpack.c.b16 %v405, %v389
    %v646 = vpack.c.b16 %v406, %v390
    %v647 = vpack.c.b16 %v407, %v391
    %v648 = vpack.c.b16 %v408, %v392
    %v649 = vpack.c.b16 %v409, %v393
    %v650 = vpack.c.b16 %v426, %v410
    %v651 = vpack.c.b16 %v427, %v411
    %v652 = vpack.c.b16 %v428, %v412
    %v653 = vpack.c.b16 %v429, %v413
    %v654 = vpack.c.b16 %v430, %v414
    %v655 = vpack.c.b16 %v431, %v415
    %v656 = vpack.c.b16 %v432, %v416
    %v657 = vpack.c.b16 %v433, %v417
    %v658 = vpack.c.b16 %v434, %v418
    %v659 = vpack.c.b16 %v435, %v419
    %v660 = vpack.c.b16 %v436, %v420
    %v661 = vpack.c.b16 %v437, %v421
    %v662 = vpack.c.b16 %v438, %v422
    %v663 = vpack.c.b16 %v439, %v423
    %v664 = vpack.c.b16 %v440, %v424
    %v665 = vpack.c.b16 %v441, %v425
    %v666 = vpack.c.b16 %v458, %v442
    %v667 = vpack.c.b16 %v459, %v443
    %v668 = vpack.c.b16 %v460, %v444
    %v669 = vpack.c.b16 %v461, %v445
    %v670 = vpack.c.b16 %v462, %v446
    %v671 = vpack.c.b16 %v463, %v447
    %v672 = vpack.c.b16 %v464, %v448
    %v673 = vpack.c.b16 %v465, %v449
    %v674 = vpack.c.b16 %v466, %v450
    %v675 = vpack.c.b16 %v467, %v451
    %v676 = vpack.c.b16 %v468, %v452
    %v677 = vpack.c.b16 %v469, %v453
    %v678 = vpack.c.b16 %v470, %v454
    %v679 = vpack.c.b16 %v471, %v455
    %v680 = vpack.c.b16 %v472, %v456
    %v681 = vpack.c.b16 %v473, %v457
    %v682 = vpack.c.b16 %v490, %v474
    %v683 = vpack.c.b16 %v491, %v475
    %v684 = vpack.c.b16 %v492, %v476
    %v685 = vpack.c.b16 %v493, %v477
    %v686 = vpack.c.b16 %v494, %v478
    %v687 = vpack.c.b16 %v495, %v479
    %v688 = vpack.c.b16 %v496, %v480
    %v689 = vpack.c.b16 %v497, %v481
    %v690 = vpack.c.b16 %v498, %v482
    %v691 = vpack.c.b16 %v499, %v483
    %v692 = vpack.c.b16 %v500, %v484
    %v693 = vpack.c.b16 %v501, %v485
    %v694 = vpack.c.b16 %v502, %v486
    %v695 = vpack.c.b16 %v503, %v487
    %v696 = vpack.c.b16 %v504, %v488
    %v697 = vpack.c.b16 %v505, %v489
    %v698 = vpack.c.b16 %v522, %v506
    %v699 = vpack.c.b16 %v523, %v507
    %v700 = vpack.c.b16 %v524, %v508
    %v701 = vpack.c.b16 %v525, %v509
    %v702 = vpack.c.b16 %v526, %v510
    %v703 = vpack.c.b16 %v527, %v511
    %v704 = vpack.c.b16 %v528, %v512
    %v705 = vpack.c.b16 %v529, %v513
    %v706 = vpack.c.b16 %v530, %v514
    %v707 = vpack.c.b16 %v531, %v515
    %v708 = vpack.c.b16 %v532, %v516
    %v709 = vpack.c.b16 %v533, %v517
    %v710 = vpack.c.b16 %v534, %v518
    %v711 = vpack.c.b16 %v535, %v519
    %v712 = vpack.c.b16 %v536, %v520
    %v713 = vpack.c.b16 %v537, %v521
    %v714 = vpack.c.b16 %v554, %v538
    %v715 = vpack.c.b16 %v555, %v539
    %v716 = vpack.c.b16 %v556, %v540
    %v717 = vpack.c.b16 %v557, %v541
    %v718 = vpack.c.b16 %v558, %v542
    %v719 = vpack.c.b16 %v559, %v543
    %v720 = vpack.c.b16 %v560, %v544
    %v721 = vpack.c.b16 %v561, %v545
    %v722 = vpack.c.b16 %v562, %v546
    %v723 = vpack.c.b16 %v563, %v547
    %v724 = vpack.c.b16 %v564, %v548
    %v725 = vpack.c.b16 %v565, %v549
    %v726 = vpack.c.b16 %v566, %v550
    %v727 = vpack.c.b16 %v567, %v551
    %v728 = vpack.c.b16 %v568, %v552
    %v729 = vpack.c.b16 %v569, %v553
    %v730 = vpack.c.b16 %v586, %v570
    %v731 = vpack.c.b16 %v587, %v571
    %v732 = vpack.c.b16 %v588, %v572
    %v733 = vpack.c.b16 %v589, %v573
    %v734 = vpack.c.b16 %v590, %v574
    %v735 = vpack.c.b16 %v591, %v575
    %v736 = vpack.c.b16 %v592, %v576
    %v737 = vpack.c.b16 %v593, %v577
    %v738 = vpack.c.b16 %v594, %v578
    %v739 = vpack.c.b16 %v595, %v579
    %v740 = vpack.c.b16 %v596, %v580
    %v741 = vpack.c.b16 %v597, %v581
    %v742 = vpack.c.b16 %v598, %v582
    %v743 = vpack.c.b16 %v599, %v583
    %v744 = vpack.c.b16 %v600, %v584
    %v745 = vpack.c.b16 %v601, %v585
    %v746 = vpack.c.b16 %v618, %v602
    %v747 = vpack.c.b16 %v619, %v603
    %v748 = vpack.c.b16 %v620, %v604
    %v749 = vpack.c.b16 %v621, %v605
    %v750 = vpack.c.b16 %v622, %v606
    %v751 = vpack.c.b16 %v623, %v607
    %v752 = vpack.c.b16 %v624, %v608
    %v753 = vpack.c.b16 %v625, %v609
    %v754 = vpack.c.b16 %v626, %v610
    %v755 = vpack.c.b16 %v627, %v611
    %v756 = vpack.c.b16 %v628, %v612
    %v757 = vpack.c.b16 %v629, %v613
    %v758 = vpack.c.b16 %v630, %v614
    %v759 = vpack.c.b16 %v631, %v615
    %v760 = vpack.c.b16 %v632, %v616
    %v761 = vpack.c.b16 %v633, %v617
    %890 = vmatprep.subr.bf16.mxu0 %v635
    %891 = vmatpush1.bf16.xpose.msra.mxu0 %v634
    %892 = vmatprep.subr.bf16.mxu0 %v651
    %893 = vmatpush1.bf16.xpose.msra.mxu0 %v650
    %894 = vmatprep.subr.bf16.mxu0 %v667
    %895 = vmatpush1.bf16.xpose.msra.mxu0 %v666
    %896 = vmatprep.subr.bf16.mxu0 %v683
    %897 = vmatpush1.bf16.xpose.msra.mxu0 %v682
    %898 = vmatprep.subr.bf16.mxu0 %v699
    %899 = vmatpush1.bf16.xpose.msra.mxu0 %v698
    %900 = vmatprep.subr.bf16.mxu0 %v715
    %901 = vmatpush1.bf16.xpose.msra.mxu0 %v714
    %902 = vmatprep.subr.bf16.mxu0 %v731
    %903 = vmatpush1.bf16.xpose.msra.mxu0 %v730
    %904 = vmatprep.subr.bf16.mxu0 %v747
    %905 = vmatpush1.bf16.xpose.msra.mxu0 %v746
    %906 = vmatprep.subr.bf16.mxu0 0
    %907 = vmatpush1.bf16.xpose.msra.mxu0 0
    %908 = vmatprep.subr.bf16.mxu0 0
    %909 = vmatpush1.bf16.xpose.msra.mxu0 0
    %910 = vmatprep.subr.bf16.mxu0 0
    %911 = vmatpush1.bf16.xpose.msra.mxu0 0
    %912 = vmatprep.subr.bf16.mxu0 0
    %913 = vmatpush1.bf16.xpose.msra.mxu0 0
    %914 = vmatprep.subr.bf16.mxu0 0
    %915 = vmatpush1.bf16.xpose.msra.mxu0 0
    %916 = vmatprep.subr.bf16.mxu0 0
    %917 = vmatpush1.bf16.xpose.msra.mxu0 0
    %918 = vmatprep.subr.bf16.mxu0 0
    %919 = vmatpush1.bf16.xpose.msra.mxu0 0
    %920 = vmatprep.subr.bf16.mxu0 0
    %921 = vmatpush1.bf16.xpose.msra.mxu0 0
    %922 = vmatprep.mubr.bf16.mxu0 %v219
    %923 = vmatmul.mubr.bf16.gmra.mrb[0].mxu0 %v218
    %v924 = vpop.f32.mrb[0].mxu0
    %v925 = vadd.f32 %v192, %v924
    %v926 = vpop.f32.mrb[0].mxu0
    %v927 = vpop.f32.mrb[0].mxu0
    %v928 = vpop.f32.mrb[0].mxu0
    %929 = vdwg.mxu0
    %930 = vmatprep.subr.bf16.mxu0 %v637
    %931 = vmatpush1.bf16.xpose.msra.mxu0 %v636
    %932 = vmatprep.subr.bf16.mxu0 %v653
    %933 = vmatpush1.bf16.xpose.msra.mxu0 %v652
    %934 = vmatprep.subr.bf16.mxu0 %v669
    %935 = vmatpush1.bf16.xpose.msra.mxu0 %v668
    %936 = vmatprep.subr.bf16.mxu0 %v685
    %937 = vmatpush1.bf16.xpose.msra.mxu0 %v684
    %938 = vmatprep.subr.bf16.mxu0 %v701
    %939 = vmatpush1.bf16.xpose.msra.mxu0 %v700
    %940 = vmatprep.subr.bf16.mxu0 %v717
    %941 = vmatpush1.bf16.xpose.msra.mxu0 %v716
    %942 = vmatprep.subr.bf16.mxu0 %v733
    %943 = vmatpush1.bf16.xpose.msra.mxu0 %v732
    %944 = vmatprep.subr.bf16.mxu0 %v749
    %945 = vmatpush1.bf16.xpose.msra.mxu0 %v748
    %946 = vmatprep.subr.bf16.mxu0 0
    %947 = vmatpush1.bf16.xpose.msra.mxu0 0
    %948 = vmatprep.subr.bf16.mxu0 0
    %949 = vmatpush1.bf16.xpose.msra.mxu0 0
    %950 = vmatprep.subr.bf16.mxu0 0
    %951 = vmatpush1.bf16.xpose.msra.mxu0 0
    %952 = vmatprep.subr.bf16.mxu0 0
    %953 = vmatpush1.bf16.xpose.msra.mxu0 0
    %954 = vmatprep.subr.bf16.mxu0 0
    %955 = vmatpush1.bf16.xpose.msra.mxu0 0
    %956 = vmatprep.subr.bf16.mxu0 0
    %957 = vmatpush1.bf16.xpose.msra.mxu0 0
    %958 = vmatprep.subr.bf16.mxu0 0
    %959 = vmatpush1.bf16.xpose.msra.mxu0 0
    %960 = vmatprep.subr.bf16.mxu0 0
    %961 = vmatpush1.bf16.xpose.msra.mxu0 0
    %962 = vmatprep.mubr.bf16.mxu0 %v221
    %963 = vmatmul.mubr.bf16.gmra.mrb[0].mxu0 %v220
    %v964 = vpop.f32.mrb[0].mxu0
    %v965 = vadd.f32 %v925, %v964
    %v966 = vpop.f32.mrb[0].mxu0
    %v967 = vpop.f32.mrb[0].mxu0
    %v968 = vpop.f32.mrb[0].mxu0
    %969 = vdwg.mxu0
    %970 = vmatprep.subr.bf16.mxu0 %v639
    %971 = vmatpush1.bf16.xpose.msra.mxu0 %v638
    %972 = vmatprep.subr.bf16.mxu0 %v655
    %973 = vmatpush1.bf16.xpose.msra.mxu0 %v654
    %974 = vmatprep.subr.bf16.mxu0 %v671
    %975 = vmatpush1.bf16.xpose.msra.mxu0 %v670
    %976 = vmatprep.subr.bf16.mxu0 %v687
    %977 = vmatpush1.bf16.xpose.msra.mxu0 %v686
    %978 = vmatprep.subr.bf16.mxu0 %v703
    %979 = vmatpush1.bf16.xpose.msra.mxu0 %v702
    %980 = vmatprep.subr.bf16.mxu0 %v719
    %981 = vmatpush1.bf16.xpose.msra.mxu0 %v718
    %982 = vmatprep.subr.bf16.mxu0 %v735
    %983 = vmatpush1.bf16.xpose.msra.mxu0 %v734
    %984 = vmatprep.subr.bf16.mxu0 %v751
    %985 = vmatpush1.bf16.xpose.msra.mxu0 %v750
    %986 = vmatprep.subr.bf16.mxu0 0
    %987 = vmatpush1.bf16.xpose.msra.mxu0 0
    %988 = vmatprep.subr.bf16.mxu0 0
    %989 = vmatpush1.bf16.xpose.msra.mxu0 0
    %990 = vmatprep.subr.bf16.mxu0 0
    %991 = vmatpush1.bf16.xpose.msra.mxu0 0
    %992 = vmatprep.subr.bf16.mxu0 0
    %993 = vmatpush1.bf16.xpose.msra.mxu0 0
    %994 = vmatprep.subr.bf16.mxu0 0
    %995 = vmatpush1.bf16.xpose.msra.mxu0 0
    %996 = vmatprep.subr.bf16.mxu0 0
    %997 = vmatpush1.bf16.xpose.msra.mxu0 0
    %998 = vmatprep.subr.bf16.mxu0 0
    %999 = vmatpush1.bf16.xpose.msra.mxu0 0
    %1000 = vmatprep.subr.bf16.mxu0 0
    %1001 = vmatpush1.bf16.xpose.msra.mxu0 0
    %1002 = vmatprep.mubr.bf16.mxu0 %v223
    %1003 = vmatmul.mubr.bf16.gmra.mrb[0].mxu0 %v222
    %v1004 = vpop.f32.mrb[0].mxu0
    %v1005 = vadd.f32 %v965, %v1004
    %v1006 = vpop.f32.mrb[0].mxu0
    %v1007 = vpop.f32.mrb[0].mxu0
    %v1008 = vpop.f32.mrb[0].mxu0
    %1009 = vdwg.mxu0
    %1010 = vmatprep.subr.bf16.mxu0 %v641
    %1011 = vmatpush1.bf16.xpose.msra.mxu0 %v640
    %1012 = vmatprep.subr.bf16.mxu0 %v657
    %1013 = vmatpush1.bf16.xpose.msra.mxu0 %v656
    %1014 = vmatprep.subr.bf16.mxu0 %v673
    %1015 = vmatpush1.bf16.xpose.msra.mxu0 %v672
    %1016 = vmatprep.subr.bf16.mxu0 %v689
    %1017 = vmatpush1.bf16.xpose.msra.mxu0 %v688
    %1018 = vmatprep.subr.bf16.mxu0 %v705
    %1019 = vmatpush1.bf16.xpose.msra.mxu0 %v704
    %1020 = vmatprep.subr.bf16.mxu0 %v721
    %1021 = vmatpush1.bf16.xpose.msra.mxu0 %v720
    %1022 = vmatprep.subr.bf16.mxu0 %v737
    %1023 = vmatpush1.bf16.xpose.msra.mxu0 %v736
    %1024 = vmatprep.subr.bf16.mxu0 %v753
    %1025 = vmatpush1.bf16.xpose.msra.mxu0 %v752
    %1026 = vmatprep.subr.bf16.mxu0 0
    %1027 = vmatpush1.bf16.xpose.msra.mxu0 0
    %1028 = vmatprep.subr.bf16.mxu0 0
    %1029 = vmatpush1.bf16.xpose.msra.mxu0 0
    %1030 = vmatprep.subr.bf16.mxu0 0
    %1031 = vmatpush1.bf16.xpose.msra.mxu0 0
    %1032 = vmatprep.subr.bf16.mxu0 0
    %1033 = vmatpush1.bf16.xpose.msra.mxu0 0
    %1034 = vmatprep.subr.bf16.mxu0 0
    %1035 = vmatpush1.bf16.xpose.msra.mxu0 0
    %1036 = vmatprep.subr.bf16.mxu0 0
    %1037 = vmatpush1.bf16.xpose.msra.mxu0 0
    %1038 = vmatprep.subr.bf16.mxu0 0
    %1039 = vmatpush1.bf16.xpose.msra.mxu0 0
    %1040 = vmatprep.subr.bf16.mxu0 0
    %1041 = vmatpush1.bf16.xpose.msra.mxu0 0
    %1042 = vmatprep.mubr.bf16.mxu0 %v225
    %1043 = vmatmul.mubr.bf16.gmra.mrb[0].mxu0 %v224
    %v1044 = vpop.f32.mrb[0].mxu0
    %v1045 = vadd.f32 %v1005, %v1044
    %v1046 = vpop.f32.mrb[0].mxu0
    %v1047 = vpop.f32.mrb[0].mxu0
    %v1048 = vpop.f32.mrb[0].mxu0
    %1049 = vdwg.mxu0
    %1050 = vmatprep.subr.bf16.mxu0 %v643
    %1051 = vmatpush1.bf16.xpose.msra.mxu0 %v642
    %1052 = vmatprep.subr.bf16.mxu0 %v659
    %1053 = vmatpush1.bf16.xpose.msra.mxu0 %v658
    %1054 = vmatprep.subr.bf16.mxu0 %v675
    %1055 = vmatpush1.bf16.xpose.msra.mxu0 %v674
    %1056 = vmatprep.subr.bf16.mxu0 %v691
    %1057 = vmatpush1.bf16.xpose.msra.mxu0 %v690
    %1058 = vmatprep.subr.bf16.mxu0 %v707
    %1059 = vmatpush1.bf16.xpose.msra.mxu0 %v706
    %1060 = vmatprep.subr.bf16.mxu0 %v723
    %1061 = vmatpush1.bf16.xpose.msra.mxu0 %v722
    %1062 = vmatprep.subr.bf16.mxu0 %v739
    %1063 = vmatpush1.bf16.xpose.msra.mxu0 %v738
    %1064 = vmatprep.subr.bf16.mxu0 %v755
    %1065 = vmatpush1.bf16.xpose.msra.mxu0 %v754
    %1066 = vmatprep.subr.bf16.mxu0 0
    %1067 = vmatpush1.bf16.xpose.msra.mxu0 0
    %1068 = vmatprep.subr.bf16.mxu0 0
    %1069 = vmatpush1.bf16.xpose.msra.mxu0 0
    %1070 = vmatprep.subr.bf16.mxu0 0
    %1071 = vmatpush1.bf16.xpose.msra.mxu0 0
    %1072 = vmatprep.subr.bf16.mxu0 0
    %1073 = vmatpush1.bf16.xpose.msra.mxu0 0
    %1074 = vmatprep.subr.bf16.mxu0 0
    %1075 = vmatpush1.bf16.xpose.msra.mxu0 0
    %1076 = vmatprep.subr.bf16.mxu0 0
    %1077 = vmatpush1.bf16.xpose.msra.mxu0 0
    %1078 = vmatprep.subr.bf16.mxu0 0
    %1079 = vmatpush1.bf16.xpose.msra.mxu0 0
    %1080 = vmatprep.subr.bf16.mxu0 0
    %1081 = vmatpush1.bf16.xpose.msra.mxu0 0
    %1082 = vmatprep.mubr.bf16.mxu0 %v227
    %1083 = vmatmul.mubr.bf16.gmra.mrb[0].mxu0 %v226
    %v1084 = vpop.f32.mrb[0].mxu0
    %v1085 = vadd.f32 %v1045, %v1084
    %v1086 = vpop.f32.mrb[0].mxu0
    %v1087 = vpop.f32.mrb[0].mxu0
    %v1088 = vpop.f32.mrb[0].mxu0
    %1089 = vdwg.mxu0
    %1090 = vmatprep.subr.bf16.mxu0 %v645
    %1091 = vmatpush1.bf16.xpose.msra.mxu0 %v644
    %1092 = vmatprep.subr.bf16.mxu0 %v661
    %1093 = vmatpush1.bf16.xpose.msra.mxu0 %v660
    %1094 = vmatprep.subr.bf16.mxu0 %v677
    %1095 = vmatpush1.bf16.xpose.msra.mxu0 %v676
    %1096 = vmatprep.subr.bf16.mxu0 %v693
    %1097 = vmatpush1.bf16.xpose.msra.mxu0 %v692
    %1098 = vmatprep.subr.bf16.mxu0 %v709
    %1099 = vmatpush1.bf16.xpose.msra.mxu0 %v708
    %1100 = vmatprep.subr.bf16.mxu0 %v725
    %1101 = vmatpush1.bf16.xpose.msra.mxu0 %v724
    %1102 = vmatprep.subr.bf16.mxu0 %v741
    %1103 = vmatpush1.bf16.xpose.msra.mxu0 %v740
    %1104 = vmatprep.subr.bf16.mxu0 %v757
    %1105 = vmatpush1.bf16.xpose.msra.mxu0 %v756
    %1106 = vmatprep.subr.bf16.mxu0 0
    %1107 = vmatpush1.bf16.xpose.msra.mxu0 0
    %1108 = vmatprep.subr.bf16.mxu0 0
    %1109 = vmatpush1.bf16.xpose.msra.mxu0 0
    %1110 = vmatprep.subr.bf16.mxu0 0
    %1111 = vmatpush1.bf16.xpose.msra.mxu0 0
    %1112 = vmatprep.subr.bf16.mxu0 0
    %1113 = vmatpush1.bf16.xpose.msra.mxu0 0
    %1114 = vmatprep.subr.bf16.mxu0 0
    %1115 = vmatpush1.bf16.xpose.msra.mxu0 0
    %1116 = vmatprep.subr.bf16.mxu0 0
    %1117 = vmatpush1.bf16.xpose.msra.mxu0 0
    %1118 = vmatprep.subr.bf16.mxu0 0
    %1119 = vmatpush1.bf16.xpose.msra.mxu0 0
    %1120 = vmatprep.subr.bf16.mxu0 0
    %1121 = vmatpush1.bf16.xpose.msra.mxu0 0
    %1122 = vmatprep.mubr.bf16.mxu0 %v229
    %1123 = vmatmul.mubr.bf16.gmra.mrb[0].mxu0 %v228
    %v1124 = vpop.f32.mrb[0].mxu0
    %v1125 = vadd.f32 %v1085, %v1124
    %v1126 = vpop.f32.mrb[0].mxu0
    %v1127 = vpop.f32.mrb[0].mxu0
    %v1128 = vpop.f32.mrb[0].mxu0
    %1129 = vdwg.mxu0
    %1130 = vmatprep.subr.bf16.mxu0 %v647
    %1131 = vmatpush1.bf16.xpose.msra.mxu0 %v646
    %1132 = vmatprep.subr.bf16.mxu0 %v663
    %1133 = vmatpush1.bf16.xpose.msra.mxu0 %v662
    %1134 = vmatprep.subr.bf16.mxu0 %v679
    %1135 = vmatpush1.bf16.xpose.msra.mxu0 %v678
    %1136 = vmatprep.subr.bf16.mxu0 %v695
    %1137 = vmatpush1.bf16.xpose.msra.mxu0 %v694
    %1138 = vmatprep.subr.bf16.mxu0 %v711
    %1139 = vmatpush1.bf16.xpose.msra.mxu0 %v710
    %1140 = vmatprep.subr.bf16.mxu0 %v727
    %1141 = vmatpush1.bf16.xpose.msra.mxu0 %v726
    %1142 = vmatprep.subr.bf16.mxu0 %v743
    %1143 = vmatpush1.bf16.xpose.msra.mxu0 %v742
    %1144 = vmatprep.subr.bf16.mxu0 %v759
    %1145 = vmatpush1.bf16.xpose.msra.mxu0 %v758
    %1146 = vmatprep.subr.bf16.mxu0 0
    %1147 = vmatpush1.bf16.xpose.msra.mxu0 0
    %1148 = vmatprep.subr.bf16.mxu0 0
    %1149 = vmatpush1.bf16.xpose.msra.mxu0 0
    %1150 = vmatprep.subr.bf16.mxu0 0
    %1151 = vmatpush1.bf16.xpose.msra.mxu0 0
    %1152 = vmatprep.subr.bf16.mxu0 0
    %1153 = vmatpush1.bf16.xpose.msra.mxu0 0
    %1154 = vmatprep.subr.bf16.mxu0 0
    %1155 = vmatpush1.bf16.xpose.msra.mxu0 0
    %1156 = vmatprep.subr.bf16.mxu0 0
    %1157 = vmatpush1.bf16.xpose.msra.mxu0 0
    %1158 = vmatprep.subr.bf16.mxu0 0
    %1159 = vmatpush1.bf16.xpose.msra.mxu0 0
    %1160 = vmatprep.subr.bf16.mxu0 0
    %1161 = vmatpush1.bf16.xpose.msra.mxu0 0
    %1162 = vmatprep.mubr.bf16.mxu0 %v231
    %1163 = vmatmul.mubr.bf16.gmra.mrb[0].mxu0 %v230
    %v1164 = vpop.f32.mrb[0].mxu0
    %v1165 = vadd.f32 %v1125, %v1164
    %v1166 = vpop.f32.mrb[0].mxu0
    %v1167 = vpop.f32.mrb[0].mxu0
    %v1168 = vpop.f32.mrb[0].mxu0
    %1169 = vdwg.mxu0
    %1170 = vmatprep.subr.bf16.mxu0 %v649
    %1171 = vmatpush1.bf16.xpose.msra.mxu0 %v648
    %1172 = vmatprep.subr.bf16.mxu0 %v665
    %1173 = vmatpush1.bf16.xpose.msra.mxu0 %v664
    %1174 = vmatprep.subr.bf16.mxu0 %v681
    %1175 = vmatpush1.bf16.xpose.msra.mxu0 %v680
    %1176 = vmatprep.subr.bf16.mxu0 %v697
    %1177 = vmatpush1.bf16.xpose.msra.mxu0 %v696
    %1178 = vmatprep.subr.bf16.mxu0 %v713
    %1179 = vmatpush1.bf16.xpose.msra.mxu0 %v712
    %1180 = vmatprep.subr.bf16.mxu0 %v729
    %1181 = vmatpush1.bf16.xpose.msra.mxu0 %v728
    %1182 = vmatprep.subr.bf16.mxu0 %v745
    %1183 = vmatpush1.bf16.xpose.msra.mxu0 %v744
    %1184 = vmatprep.subr.bf16.mxu0 %v761
    %1185 = vmatpush1.bf16.xpose.msra.mxu0 %v760
    %1186 = vmatprep.subr.bf16.mxu0 0
    %1187 = vmatpush1.bf16.xpose.msra.mxu0 0
    %1188 = vmatprep.subr.bf16.mxu0 0
    %1189 = vmatpush1.bf16.xpose.msra.mxu0 0
    %1190 = vmatprep.subr.bf16.mxu0 0
    %1191 = vmatpush1.bf16.xpose.msra.mxu0 0
    %1192 = vmatprep.subr.bf16.mxu0 0
    %1193 = vmatpush1.bf16.xpose.msra.mxu0 0
    %1194 = vmatprep.subr.bf16.mxu0 0
    %1195 = vmatpush1.bf16.xpose.msra.mxu0 0
    %1196 = vmatprep.subr.bf16.mxu0 0
    %1197 = vmatpush1.bf16.xpose.msra.mxu0 0
    %1198 = vmatprep.subr.bf16.mxu0 0
    %1199 = vmatpush1.bf16.xpose.msra.mxu0 0
    %1200 = vmatprep.subr.bf16.mxu0 0
    %1201 = vmatpush1.bf16.xpose.msra.mxu0 0
    %1202 = vmatprep.mubr.bf16.mxu0 %v233
    %1203 = vmatmul.mubr.bf16.gmra.mrb[0].mxu0 %v232
    %v1204 = vpop.f32.mrb[0].mxu0
    %v1205 = vadd.f32 %v1165, %v1204
    %v1206 = vpop.f32.mrb[0].mxu0
    %v1207 = vpop.f32.mrb[0].mxu0
    %v1208 = vpop.f32.mrb[0].mxu0
    %1209 = vdwg.mxu0
    %1210 = vst [vmem:[%s5] sm:$0xff] %v1205
    %v1211 = vld [vmem:[%s1] sm:$0xff]
    %v1212 = vld [vmem:[%s1 + $0x8] sm:$0xff]
    %v1213 = vld [vmem:[%s1 + $0x10] sm:$0xff]
    %v1214 = vld [vmem:[%s1 + $0x18] sm:$0xff]
    %v1215 = vld [vmem:[%s1 + $0x20] sm:$0xff]
    %v1216 = vld [vmem:[%s1 + $0x28] sm:$0xff]
    %v1217 = vld [vmem:[%s1 + $0x30] sm:$0xff]
    %v1218 = vld [vmem:[%s1 + $0x38] sm:$0xff]
    %v1219 = vld [vmem:[#allocation4] sm:$0xff]
    %v1220 = vld [vmem:[#allocation4 + $0x8] sm:$0xff]
    %v1221 = vld [vmem:[#allocation4 + $0x10] sm:$0xff]
    %v1222 = vld [vmem:[#allocation4 + $0x18] sm:$0xff]
    %v1223 = vld [vmem:[#allocation4 + $0x20] sm:$0xff]
    %v1224 = vld [vmem:[#allocation4 + $0x28] sm:$0xff]
    %v1225 = vld [vmem:[#allocation4 + $0x30] sm:$0xff]
    %v1226 = vld [vmem:[#allocation4 + $0x38] sm:$0xff]
    %v1227 = vld [vmem:[#allocation4 + $0x40] sm:$0xff]
    %v1228 = vld [vmem:[#allocation4 + $0x48] sm:$0xff]
    %v1229 = vld [vmem:[#allocation4 + $0x50] sm:$0xff]
    %v1230 = vld [vmem:[#allocation4 + $0x58] sm:$0xff]
    %v1231 = vld [vmem:[#allocation4 + $0x60] sm:$0xff]
    %v1232 = vld [vmem:[#allocation4 + $0x68] sm:$0xff]
    %v1233 = vld [vmem:[#allocation4 + $0x70] sm:$0xff]
    %v1234 = vld [vmem:[#allocation4 + $0x78] sm:$0xff]
    %v1235 = vld [vmem:[#allocation4 + $0x80] sm:$0xff]
    %v1236 = vld [vmem:[#allocation4 + $0x88] sm:$0xff]
    %v1237 = vld [vmem:[#allocation4 + $0x90] sm:$0xff]
    %v1238 = vld [vmem:[#allocation4 + $0x98] sm:$0xff]
    %v1239 = vld [vmem:[#allocation4 + $0xa0] sm:$0xff]
    %v1240 = vld [vmem:[#allocation4 + $0xa8] sm:$0xff]
    %v1241 = vld [vmem:[#allocation4 + $0xb0] sm:$0xff]
    %v1242 = vld [vmem:[#allocation4 + $0xb8] sm:$0xff]
    %v1243 = vld [vmem:[#allocation4 + $0xc0] sm:$0xff]
    %v1244 = vld [vmem:[#allocation4 + $0xc8] sm:$0xff]
    %v1245 = vld [vmem:[#allocation4 + $0xd0] sm:$0xff]
    %v1246 = vld [vmem:[#allocation4 + $0xd8] sm:$0xff]
    %v1247 = vld [vmem:[#allocation4 + $0xe0] sm:$0xff]
    %v1248 = vld [vmem:[#allocation4 + $0xe8] sm:$0xff]
    %v1249 = vld [vmem:[#allocation4 + $0xf0] sm:$0xff]
    %v1250 = vld [vmem:[#allocation4 + $0xf8] sm:$0xff]
    %v1251 = vld [vmem:[#allocation4 + $0x100] sm:$0xff]
    %v1252 = vld [vmem:[#allocation4 + $0x108] sm:$0xff]
    %v1253 = vld [vmem:[#allocation4 + $0x110] sm:$0xff]
    %v1254 = vld [vmem:[#allocation4 + $0x118] sm:$0xff]
    %v1255 = vld [vmem:[#allocation4 + $0x120] sm:$0xff]
    %v1256 = vld [vmem:[#allocation4 + $0x128] sm:$0xff]
    %v1257 = vld [vmem:[#allocation4 + $0x130] sm:$0xff]
    %v1258 = vld [vmem:[#allocation4 + $0x138] sm:$0xff]
    %v1259 = vld [vmem:[#allocation4 + $0x140] sm:$0xff]
    %v1260 = vld [vmem:[#allocation4 + $0x148] sm:$0xff]
    %v1261 = vld [vmem:[#allocation4 + $0x150] sm:$0xff]
    %v1262 = vld [vmem:[#allocation4 + $0x158] sm:$0xff]
    %v1263 = vld [vmem:[#allocation4 + $0x160] sm:$0xff]
    %v1264 = vld [vmem:[#allocation4 + $0x168] sm:$0xff]
    %v1265 = vld [vmem:[#allocation4 + $0x170] sm:$0xff]
    %v1266 = vld [vmem:[#allocation4 + $0x178] sm:$0xff]
    %v1267 = vld [vmem:[#allocation4 + $0x180] sm:$0xff]
    %v1268 = vld [vmem:[#allocation4 + $0x188] sm:$0xff]
    %v1269 = vld [vmem:[#allocation4 + $0x190] sm:$0xff]
    %v1270 = vld [vmem:[#allocation4 + $0x198] sm:$0xff]
    %v1271 = vld [vmem:[#allocation4 + $0x1a0] sm:$0xff]
    %v1272 = vld [vmem:[#allocation4 + $0x1a8] sm:$0xff]
    %v1273 = vld [vmem:[#allocation4 + $0x1b0] sm:$0xff]
    %v1274 = vld [vmem:[#allocation4 + $0x1b8] sm:$0xff]
    %v1275 = vld [vmem:[#allocation4 + $0x1c0] sm:$0xff]
    %v1276 = vld [vmem:[#allocation4 + $0x1c8] sm:$0xff]
    %v1277 = vld [vmem:[#allocation4 + $0x1d0] sm:$0xff]
    %v1278 = vld [vmem:[#allocation4 + $0x1d8] sm:$0xff]
    %v1279 = vld [vmem:[#allocation4 + $0x1e0] sm:$0xff]
    %v1280 = vld [vmem:[#allocation4 + $0x1e8] sm:$0xff]
    %v1281 = vld [vmem:[#allocation4 + $0x1f0] sm:$0xff]
    %v1282 = vld [vmem:[#allocation4 + $0x1f8] sm:$0xff]
    %v1283 = vld [vmem:[#allocation4 + $0x200] sm:$0xff]
    %v1284 = vld [vmem:[#allocation4 + $0x208] sm:$0xff]
    %v1285 = vld [vmem:[#allocation4 + $0x210] sm:$0xff]
    %v1286 = vld [vmem:[#allocation4 + $0x218] sm:$0xff]
    %v1287 = vld [vmem:[#allocation4 + $0x220] sm:$0xff]
    %v1288 = vld [vmem:[#allocation4 + $0x228] sm:$0xff]
    %v1289 = vld [vmem:[#allocation4 + $0x230] sm:$0xff]
    %v1290 = vld [vmem:[#allocation4 + $0x238] sm:$0xff]
    %v1291 = vld [vmem:[#allocation4 + $0x240] sm:$0xff]
    %v1292 = vld [vmem:[#allocation4 + $0x248] sm:$0xff]
    %v1293 = vld [vmem:[#allocation4 + $0x250] sm:$0xff]
    %v1294 = vld [vmem:[#allocation4 + $0x258] sm:$0xff]
    %v1295 = vld [vmem:[#allocation4 + $0x260] sm:$0xff]
    %v1296 = vld [vmem:[#allocation4 + $0x268] sm:$0xff]
    %v1297 = vld [vmem:[#allocation4 + $0x270] sm:$0xff]
    %v1298 = vld [vmem:[#allocation4 + $0x278] sm:$0xff]
    %v1299 = vld [vmem:[#allocation4 + $0x280] sm:$0xff]
    %v1300 = vld [vmem:[#allocation4 + $0x288] sm:$0xff]
    %v1301 = vld [vmem:[#allocation4 + $0x290] sm:$0xff]
    %v1302 = vld [vmem:[#allocation4 + $0x298] sm:$0xff]
    %v1303 = vld [vmem:[#allocation4 + $0x2a0] sm:$0xff]
    %v1304 = vld [vmem:[#allocation4 + $0x2a8] sm:$0xff]
    %v1305 = vld [vmem:[#allocation4 + $0x2b0] sm:$0xff]
    %v1306 = vld [vmem:[#allocation4 + $0x2b8] sm:$0xff]
    %v1307 = vld [vmem:[#allocation4 + $0x2c0] sm:$0xff]
    %v1308 = vld [vmem:[#allocation4 + $0x2c8] sm:$0xff]
    %v1309 = vld [vmem:[#allocation4 + $0x2d0] sm:$0xff]
    %v1310 = vld [vmem:[#allocation4 + $0x2d8] sm:$0xff]
    %v1311 = vld [vmem:[#allocation4 + $0x2e0] sm:$0xff]
    %v1312 = vld [vmem:[#allocation4 + $0x2e8] sm:$0xff]
    %v1313 = vld [vmem:[#allocation4 + $0x2f0] sm:$0xff]
    %v1314 = vld [vmem:[#allocation4 + $0x2f8] sm:$0xff]
    %v1315 = vld [vmem:[#allocation4 + $0x300] sm:$0xff]
    %v1316 = vld [vmem:[#allocation4 + $0x308] sm:$0xff]
    %v1317 = vld [vmem:[#allocation4 + $0x310] sm:$0xff]
    %v1318 = vld [vmem:[#allocation4 + $0x318] sm:$0xff]
    %v1319 = vld [vmem:[#allocation4 + $0x320] sm:$0xff]
    %v1320 = vld [vmem:[#allocation4 + $0x328] sm:$0xff]
    %v1321 = vld [vmem:[#allocation4 + $0x330] sm:$0xff]
    %v1322 = vld [vmem:[#allocation4 + $0x338] sm:$0xff]
    %v1323 = vld [vmem:[#allocation4 + $0x340] sm:$0xff]
    %v1324 = vld [vmem:[#allocation4 + $0x348] sm:$0xff]
    %v1325 = vld [vmem:[#allocation4 + $0x350] sm:$0xff]
    %v1326 = vld [vmem:[#allocation4 + $0x358] sm:$0xff]
    %v1327 = vld [vmem:[#allocation4 + $0x360] sm:$0xff]
    %v1328 = vld [vmem:[#allocation4 + $0x368] sm:$0xff]
    %v1329 = vld [vmem:[#allocation4 + $0x370] sm:$0xff]
    %v1330 = vld [vmem:[#allocation4 + $0x378] sm:$0xff]
    %v1331 = vld [vmem:[#allocation4 + $0x380] sm:$0xff]
    %v1332 = vld [vmem:[#allocation4 + $0x388] sm:$0xff]
    %v1333 = vld [vmem:[#allocation4 + $0x390] sm:$0xff]
    %v1334 = vld [vmem:[#allocation4 + $0x398] sm:$0xff]
    %v1335 = vld [vmem:[#allocation4 + $0x3a0] sm:$0xff]
    %v1336 = vld [vmem:[#allocation4 + $0x3a8] sm:$0xff]
    %v1337 = vld [vmem:[#allocation4 + $0x3b0] sm:$0xff]
    %v1338 = vld [vmem:[#allocation4 + $0x3b8] sm:$0xff]
    %v1339 = vld [vmem:[#allocation4 + $0x3c0] sm:$0xff]
    %v1340 = vld [vmem:[#allocation4 + $0x3c8] sm:$0xff]
    %v1341 = vld [vmem:[#allocation4 + $0x3d0] sm:$0xff]
    %v1342 = vld [vmem:[#allocation4 + $0x3d8] sm:$0xff]
    %v1343 = vld [vmem:[#allocation4 + $0x3e0] sm:$0xff]
    %v1344 = vld [vmem:[#allocation4 + $0x3e8] sm:$0xff]
    %v1345 = vld [vmem:[#allocation4 + $0x3f0] sm:$0xff]
    %v1346 = vld [vmem:[#allocation4 + $0x3f8] sm:$0xff]
    %v1355 = vunpack.c.l.b16 %v1211
    %v1356 = vunpack.c.h.b16 %v1211
    %v1357 = vunpack.c.l.b16 %v1212
    %v1358 = vunpack.c.h.b16 %v1212
    %v1359 = vunpack.c.l.b16 %v1213
    %v1360 = vunpack.c.h.b16 %v1213
    %v1361 = vunpack.c.l.b16 %v1214
    %v1362 = vunpack.c.h.b16 %v1214
    %v1363 = vunpack.c.l.b16 %v1215
    %v1364 = vunpack.c.h.b16 %v1215
    %v1365 = vunpack.c.l.b16 %v1216
    %v1366 = vunpack.c.h.b16 %v1216
    %v1367 = vunpack.c.l.b16 %v1217
    %v1368 = vunpack.c.h.b16 %v1217
    %v1369 = vunpack.c.l.b16 %v1218
    %v1370 = vunpack.c.h.b16 %v1218
    %v1371 = vpack.c.b16 %v1355, %v1355
    %v1372 = vpack.c.b16 %v1356, %v1356
    %v1373 = vpack.c.b16 %v1357, %v1357
    %v1374 = vpack.c.b16 %v1358, %v1358
    %v1375 = vpack.c.b16 %v1359, %v1359
    %v1376 = vpack.c.b16 %v1360, %v1360
    %v1377 = vpack.c.b16 %v1361, %v1361
    %v1378 = vpack.c.b16 %v1362, %v1362
    %v1379 = vpack.c.b16 %v1363, %v1363
    %v1380 = vpack.c.b16 %v1364, %v1364
    %v1381 = vpack.c.b16 %v1365, %v1365
    %v1382 = vpack.c.b16 %v1366, %v1366
    %v1383 = vpack.c.b16 %v1367, %v1367
    %v1384 = vpack.c.b16 %v1368, %v1368
    %v1385 = vpack.c.b16 %v1369, %v1369
    %v1386 = vpack.c.b16 %v1370, %v1370
    %v1531 = vunpack.c.l.b16 %v1219
    %v1532 = vunpack.c.h.b16 %v1219
    %v1533 = vunpack.c.l.b16 %v1220
    %v1534 = vunpack.c.h.b16 %v1220
    %v1535 = vunpack.c.l.b16 %v1221
    %v1536 = vunpack.c.h.b16 %v1221
    %v1537 = vunpack.c.l.b16 %v1222
    %v1538 = vunpack.c.h.b16 %v1222
    %v1539 = vunpack.c.l.b16 %v1223
    %v1540 = vunpack.c.h.b16 %v1223
    %v1541 = vunpack.c.l.b16 %v1224
    %v1542 = vunpack.c.h.b16 %v1224
    %v1543 = vunpack.c.l.b16 %v1225
    %v1544 = vunpack.c.h.b16 %v1225
    %v1545 = vunpack.c.l.b16 %v1226
    %v1546 = vunpack.c.h.b16 %v1226
    %v1547 = vunpack.c.l.b16 %v1227
    %v1548 = vunpack.c.h.b16 %v1227
    %v1549 = vunpack.c.l.b16 %v1228
    %v1550 = vunpack.c.h.b16 %v1228
    %v1551 = vunpack.c.l.b16 %v1229
    %v1552 = vunpack.c.h.b16 %v1229
    %v1553 = vunpack.c.l.b16 %v1230
    %v1554 = vunpack.c.h.b16 %v1230
    %v1555 = vunpack.c.l.b16 %v1231
    %v1556 = vunpack.c.h.b16 %v1231
    %v1557 = vunpack.c.l.b16 %v1232
    %v1558 = vunpack.c.h.b16 %v1232
    %v1559 = vunpack.c.l.b16 %v1233
    %v1560 = vunpack.c.h.b16 %v1233
    %v1561 = vunpack.c.l.b16 %v1234
    %v1562 = vunpack.c.h.b16 %v1234
    %v1563 = vunpack.c.l.b16 %v1235
    %v1564 = vunpack.c.h.b16 %v1235
    %v1565 = vunpack.c.l.b16 %v1236
    %v1566 = vunpack.c.h.b16 %v1236
    %v1567 = vunpack.c.l.b16 %v1237
    %v1568 = vunpack.c.h.b16 %v1237
    %v1569 = vunpack.c.l.b16 %v1238
    %v1570 = vunpack.c.h.b16 %v1238
    %v1571 = vunpack.c.l.b16 %v1239
    %v1572 = vunpack.c.h.b16 %v1239
    %v1573 = vunpack.c.l.b16 %v1240
    %v1574 = vunpack.c.h.b16 %v1240
    %v1575 = vunpack.c.l.b16 %v1241
    %v1576 = vunpack.c.h.b16 %v1241
    %v1577 = vunpack.c.l.b16 %v1242
    %v1578 = vunpack.c.h.b16 %v1242
    %v1579 = vunpack.c.l.b16 %v1243
    %v1580 = vunpack.c.h.b16 %v1243
    %v1581 = vunpack.c.l.b16 %v1244
    %v1582 = vunpack.c.h.b16 %v1244
    %v1583 = vunpack.c.l.b16 %v1245
    %v1584 = vunpack.c.h.b16 %v1245
    %v1585 = vunpack.c.l.b16 %v1246
    %v1586 = vunpack.c.h.b16 %v1246
    %v1587 = vunpack.c.l.b16 %v1247
    %v1588 = vunpack.c.h.b16 %v1247
    %v1589 = vunpack.c.l.b16 %v1248
    %v1590 = vunpack.c.h.b16 %v1248
    %v1591 = vunpack.c.l.b16 %v1249
    %v1592 = vunpack.c.h.b16 %v1249
    %v1593 = vunpack.c.l.b16 %v1250
    %v1594 = vunpack.c.h.b16 %v1250
    %v1595 = vunpack.c.l.b16 %v1251
    %v1596 = vunpack.c.h.b16 %v1251
    %v1597 = vunpack.c.l.b16 %v1252
    %v1598 = vunpack.c.h.b16 %v1252
    %v1599 = vunpack.c.l.b16 %v1253
    %v1600 = vunpack.c.h.b16 %v1253
    %v1601 = vunpack.c.l.b16 %v1254
    %v1602 = vunpack.c.h.b16 %v1254
    %v1603 = vunpack.c.l.b16 %v1255
    %v1604 = vunpack.c.h.b16 %v1255
    %v1605 = vunpack.c.l.b16 %v1256
    %v1606 = vunpack.c.h.b16 %v1256
    %v1607 = vunpack.c.l.b16 %v1257
    %v1608 = vunpack.c.h.b16 %v1257
    %v1609 = vunpack.c.l.b16 %v1258
    %v1610 = vunpack.c.h.b16 %v1258
    %v1611 = vunpack.c.l.b16 %v1259
    %v1612 = vunpack.c.h.b16 %v1259
    %v1613 = vunpack.c.l.b16 %v1260
    %v1614 = vunpack.c.h.b16 %v1260
    %v1615 = vunpack.c.l.b16 %v1261
    %v1616 = vunpack.c.h.b16 %v1261
    %v1617 = vunpack.c.l.b16 %v1262
    %v1618 = vunpack.c.h.b16 %v1262
    %v1619 = vunpack.c.l.b16 %v1263
    %v1620 = vunpack.c.h.b16 %v1263
    %v1621 = vunpack.c.l.b16 %v1264
    %v1622 = vunpack.c.h.b16 %v1264
    %v1623 = vunpack.c.l.b16 %v1265
    %v1624 = vunpack.c.h.b16 %v1265
    %v1625 = vunpack.c.l.b16 %v1266
    %v1626 = vunpack.c.h.b16 %v1266
    %v1627 = vunpack.c.l.b16 %v1267
    %v1628 = vunpack.c.h.b16 %v1267
    %v1629 = vunpack.c.l.b16 %v1268
    %v1630 = vunpack.c.h.b16 %v1268
    %v1631 = vunpack.c.l.b16 %v1269
    %v1632 = vunpack.c.h.b16 %v1269
    %v1633 = vunpack.c.l.b16 %v1270
    %v1634 = vunpack.c.h.b16 %v1270
    %v1635 = vunpack.c.l.b16 %v1271
    %v1636 = vunpack.c.h.b16 %v1271
    %v1637 = vunpack.c.l.b16 %v1272
    %v1638 = vunpack.c.h.b16 %v1272
    %v1639 = vunpack.c.l.b16 %v1273
    %v1640 = vunpack.c.h.b16 %v1273
    %v1641 = vunpack.c.l.b16 %v1274
    %v1642 = vunpack.c.h.b16 %v1274
    %v1643 = vunpack.c.l.b16 %v1275
    %v1644 = vunpack.c.h.b16 %v1275
    %v1645 = vunpack.c.l.b16 %v1276
    %v1646 = vunpack.c.h.b16 %v1276
    %v1647 = vunpack.c.l.b16 %v1277
    %v1648 = vunpack.c.h.b16 %v1277
    %v1649 = vunpack.c.l.b16 %v1278
    %v1650 = vunpack.c.h.b16 %v1278
    %v1651 = vunpack.c.l.b16 %v1279
    %v1652 = vunpack.c.h.b16 %v1279
    %v1653 = vunpack.c.l.b16 %v1280
    %v1654 = vunpack.c.h.b16 %v1280
    %v1655 = vunpack.c.l.b16 %v1281
    %v1656 = vunpack.c.h.b16 %v1281
    %v1657 = vunpack.c.l.b16 %v1282
    %v1658 = vunpack.c.h.b16 %v1282
    %v1659 = vunpack.c.l.b16 %v1283
    %v1660 = vunpack.c.h.b16 %v1283
    %v1661 = vunpack.c.l.b16 %v1284
    %v1662 = vunpack.c.h.b16 %v1284
    %v1663 = vunpack.c.l.b16 %v1285
    %v1664 = vunpack.c.h.b16 %v1285
    %v1665 = vunpack.c.l.b16 %v1286
    %v1666 = vunpack.c.h.b16 %v1286
    %v1667 = vunpack.c.l.b16 %v1287
    %v1668 = vunpack.c.h.b16 %v1287
    %v1669 = vunpack.c.l.b16 %v1288
    %v1670 = vunpack.c.h.b16 %v1288
    %v1671 = vunpack.c.l.b16 %v1289
    %v1672 = vunpack.c.h.b16 %v1289
    %v1673 = vunpack.c.l.b16 %v1290
    %v1674 = vunpack.c.h.b16 %v1290
    %v1675 = vunpack.c.l.b16 %v1291
    %v1676 = vunpack.c.h.b16 %v1291
    %v1677 = vunpack.c.l.b16 %v1292
    %v1678 = vunpack.c.h.b16 %v1292
    %v1679 = vunpack.c.l.b16 %v1293
    %v1680 = vunpack.c.h.b16 %v1293
    %v1681 = vunpack.c.l.b16 %v1294
    %v1682 = vunpack.c.h.b16 %v1294
    %v1683 = vunpack.c.l.b16 %v1295
    %v1684 = vunpack.c.h.b16 %v1295
    %v1685 = vunpack.c.l.b16 %v1296
    %v1686 = vunpack.c.h.b16 %v1296
    %v1687 = vunpack.c.l.b16 %v1297
    %v1688 = vunpack.c.h.b16 %v1297
    %v1689 = vunpack.c.l.b16 %v1298
    %v1690 = vunpack.c.h.b16 %v1298
    %v1691 = vunpack.c.l.b16 %v1299
    %v1692 = vunpack.c.h.b16 %v1299
    %v1693 = vunpack.c.l.b16 %v1300
    %v1694 = vunpack.c.h.b16 %v1300
    %v1695 = vunpack.c.l.b16 %v1301
    %v1696 = vunpack.c.h.b16 %v1301
    %v1697 = vunpack.c.l.b16 %v1302
    %v1698 = vunpack.c.h.b16 %v1302
    %v1699 = vunpack.c.l.b16 %v1303
    %v1700 = vunpack.c.h.b16 %v1303
    %v1701 = vunpack.c.l.b16 %v1304
    %v1702 = vunpack.c.h.b16 %v1304
    %v1703 = vunpack.c.l.b16 %v1305
    %v1704 = vunpack.c.h.b16 %v1305
    %v1705 = vunpack.c.l.b16 %v1306
    %v1706 = vunpack.c.h.b16 %v1306
    %v1707 = vunpack.c.l.b16 %v1307
    %v1708 = vunpack.c.h.b16 %v1307
    %v1709 = vunpack.c.l.b16 %v1308
    %v1710 = vunpack.c.h.b16 %v1308
    %v1711 = vunpack.c.l.b16 %v1309
    %v1712 = vunpack.c.h.b16 %v1309
    %v1713 = vunpack.c.l.b16 %v1310
    %v1714 = vunpack.c.h.b16 %v1310
    %v1715 = vunpack.c.l.b16 %v1311
    %v1716 = vunpack.c.h.b16 %v1311
    %v1717 = vunpack.c.l.b16 %v1312
    %v1718 = vunpack.c.h.b16 %v1312
    %v1719 = vunpack.c.l.b16 %v1313
    %v1720 = vunpack.c.h.b16 %v1313
    %v1721 = vunpack.c.l.b16 %v1314
    %v1722 = vunpack.c.h.b16 %v1314
    %v1723 = vunpack.c.l.b16 %v1315
    %v1724 = vunpack.c.h.b16 %v1315
    %v1725 = vunpack.c.l.b16 %v1316
    %v1726 = vunpack.c.h.b16 %v1316
    %v1727 = vunpack.c.l.b16 %v1317
    %v1728 = vunpack.c.h.b16 %v1317
    %v1729 = vunpack.c.l.b16 %v1318
    %v1730 = vunpack.c.h.b16 %v1318
    %v1731 = vunpack.c.l.b16 %v1319
    %v1732 = vunpack.c.h.b16 %v1319
    %v1733 = vunpack.c.l.b16 %v1320
    %v1734 = vunpack.c.h.b16 %v1320
    %v1735 = vunpack.c.l.b16 %v1321
    %v1736 = vunpack.c.h.b16 %v1321
    %v1737 = vunpack.c.l.b16 %v1322
    %v1738 = vunpack.c.h.b16 %v1322
    %v1739 = vunpack.c.l.b16 %v1323
    %v1740 = vunpack.c.h.b16 %v1323
    %v1741 = vunpack.c.l.b16 %v1324
    %v1742 = vunpack.c.h.b16 %v1324
    %v1743 = vunpack.c.l.b16 %v1325
    %v1744 = vunpack.c.h.b16 %v1325
    %v1745 = vunpack.c.l.b16 %v1326
    %v1746 = vunpack.c.h.b16 %v1326
    %v1747 = vunpack.c.l.b16 %v1327
    %v1748 = vunpack.c.h.b16 %v1327
    %v1749 = vunpack.c.l.b16 %v1328
    %v1750 = vunpack.c.h.b16 %v1328
    %v1751 = vunpack.c.l.b16 %v1329
    %v1752 = vunpack.c.h.b16 %v1329
    %v1753 = vunpack.c.l.b16 %v1330
    %v1754 = vunpack.c.h.b16 %v1330
    %v1755 = vunpack.c.l.b16 %v1331
    %v1756 = vunpack.c.h.b16 %v1331
    %v1757 = vunpack.c.l.b16 %v1332
    %v1758 = vunpack.c.h.b16 %v1332
    %v1759 = vunpack.c.l.b16 %v1333
    %v1760 = vunpack.c.h.b16 %v1333
    %v1761 = vunpack.c.l.b16 %v1334
    %v1762 = vunpack.c.h.b16 %v1334
    %v1763 = vunpack.c.l.b16 %v1335
    %v1764 = vunpack.c.h.b16 %v1335
    %v1765 = vunpack.c.l.b16 %v1336
    %v1766 = vunpack.c.h.b16 %v1336
    %v1767 = vunpack.c.l.b16 %v1337
    %v1768 = vunpack.c.h.b16 %v1337
    %v1769 = vunpack.c.l.b16 %v1338
    %v1770 = vunpack.c.h.b16 %v1338
    %v1771 = vunpack.c.l.b16 %v1339
    %v1772 = vunpack.c.h.b16 %v1339
    %v1773 = vunpack.c.l.b16 %v1340
    %v1774 = vunpack.c.h.b16 %v1340
    %v1775 = vunpack.c.l.b16 %v1341
    %v1776 = vunpack.c.h.b16 %v1341
    %v1777 = vunpack.c.l.b16 %v1342
    %v1778 = vunpack.c.h.b16 %v1342
    %v1779 = vunpack.c.l.b16 %v1343
    %v1780 = vunpack.c.h.b16 %v1343
    %v1781 = vunpack.c.l.b16 %v1344
    %v1782 = vunpack.c.h.b16 %v1344
    %v1783 = vunpack.c.l.b16 %v1345
    %v1784 = vunpack.c.h.b16 %v1345
    %v1785 = vunpack.c.l.b16 %v1346
    %v1786 = vunpack.c.h.b16 %v1346
    %v1787 = vpack.c.b16 %v1547, %v1531
    %v1788 = vpack.c.b16 %v1548, %v1532
    %v1789 = vpack.c.b16 %v1549, %v1533
    %v1790 = vpack.c.b16 %v1550, %v1534
    %v1791 = vpack.c.b16 %v1551, %v1535
    %v1792 = vpack.c.b16 %v1552, %v1536
    %v1793 = vpack.c.b16 %v1553, %v1537
    %v1794 = vpack.c.b16 %v1554, %v1538
    %v1795 = vpack.c.b16 %v1555, %v1539
    %v1796 = vpack.c.b16 %v1556, %v1540
    %v1797 = vpack.c.b16 %v1557, %v1541
    %v1798 = vpack.c.b16 %v1558, %v1542
    %v1799 = vpack.c.b16 %v1559, %v1543
    %v1800 = vpack.c.b16 %v1560, %v1544
    %v1801 = vpack.c.b16 %v1561, %v1545
    %v1802 = vpack.c.b16 %v1562, %v1546
    %v1803 = vpack.c.b16 %v1579, %v1563
    %v1804 = vpack.c.b16 %v1580, %v1564
    %v1805 = vpack.c.b16 %v1581, %v1565
    %v1806 = vpack.c.b16 %v1582, %v1566
    %v1807 = vpack.c.b16 %v1583, %v1567
    %v1808 = vpack.c.b16 %v1584, %v1568
    %v1809 = vpack.c.b16 %v1585, %v1569
    %v1810 = vpack.c.b16 %v1586, %v1570
    %v1811 = vpack.c.b16 %v1587, %v1571
    %v1812 = vpack.c.b16 %v1588, %v1572
    %v1813 = vpack.c.b16 %v1589, %v1573
    %v1814 = vpack.c.b16 %v1590, %v1574
    %v1815 = vpack.c.b16 %v1591, %v1575
    %v1816 = vpack.c.b16 %v1592, %v1576
    %v1817 = vpack.c.b16 %v1593, %v1577
    %v1818 = vpack.c.b16 %v1594, %v1578
    %v1819 = vpack.c.b16 %v1611, %v1595
    %v1820 = vpack.c.b16 %v1612, %v1596
    %v1821 = vpack.c.b16 %v1613, %v1597
    %v1822 = vpack.c.b16 %v1614, %v1598
    %v1823 = vpack.c.b16 %v1615, %v1599
    %v1824 = vpack.c.b16 %v1616, %v1600
    %v1825 = vpack.c.b16 %v1617, %v1601
    %v1826 = vpack.c.b16 %v1618, %v1602
    %v1827 = vpack.c.b16 %v1619, %v1603
    %v1828 = vpack.c.b16 %v1620, %v1604
    %v1829 = vpack.c.b16 %v1621, %v1605
    %v1830 = vpack.c.b16 %v1622, %v1606
    %v1831 = vpack.c.b16 %v1623, %v1607
    %v1832 = vpack.c.b16 %v1624, %v1608
    %v1833 = vpack.c.b16 %v1625, %v1609
    %v1834 = vpack.c.b16 %v1626, %v1610
    %v1835 = vpack.c.b16 %v1643, %v1627
    %v1836 = vpack.c.b16 %v1644, %v1628
    %v1837 = vpack.c.b16 %v1645, %v1629
    %v1838 = vpack.c.b16 %v1646, %v1630
    %v1839 = vpack.c.b16 %v1647, %v1631
    %v1840 = vpack.c.b16 %v1648, %v1632
    %v1841 = vpack.c.b16 %v1649, %v1633
    %v1842 = vpack.c.b16 %v1650, %v1634
    %v1843 = vpack.c.b16 %v1651, %v1635
    %v1844 = vpack.c.b16 %v1652, %v1636
    %v1845 = vpack.c.b16 %v1653, %v1637
    %v1846 = vpack.c.b16 %v1654, %v1638
    %v1847 = vpack.c.b16 %v1655, %v1639
    %v1848 = vpack.c.b16 %v1656, %v1640
    %v1849 = vpack.c.b16 %v1657, %v1641
    %v1850 = vpack.c.b16 %v1658, %v1642
    %v1851 = vpack.c.b16 %v1675, %v1659
    %v1852 = vpack.c.b16 %v1676, %v1660
    %v1853 = vpack.c.b16 %v1677, %v1661
    %v1854 = vpack.c.b16 %v1678, %v1662
    %v1855 = vpack.c.b16 %v1679, %v1663
    %v1856 = vpack.c.b16 %v1680, %v1664
    %v1857 = vpack.c.b16 %v1681, %v1665
    %v1858 = vpack.c.b16 %v1682, %v1666
    %v1859 = vpack.c.b16 %v1683, %v1667
    %v1860 = vpack.c.b16 %v1684, %v1668
    %v1861 = vpack.c.b16 %v1685, %v1669
    %v1862 = vpack.c.b16 %v1686, %v1670
    %v1863 = vpack.c.b16 %v1687, %v1671
    %v1864 = vpack.c.b16 %v1688, %v1672
    %v1865 = vpack.c.b16 %v1689, %v1673
    %v1866 = vpack.c.b16 %v1690, %v1674
    %v1867 = vpack.c.b16 %v1707, %v1691
    %v1868 = vpack.c.b16 %v1708, %v1692
    %v1869 = vpack.c.b16 %v1709, %v1693
    %v1870 = vpack.c.b16 %v1710, %v1694
    %v1871 = vpack.c.b16 %v1711, %v1695
    %v1872 = vpack.c.b16 %v1712, %v1696
    %v1873 = vpack.c.b16 %v1713, %v1697
    %v1874 = vpack.c.b16 %v1714, %v1698
    %v1875 = vpack.c.b16 %v1715, %v1699
    %v1876 = vpack.c.b16 %v1716, %v1700
    %v1877 = vpack.c.b16 %v1717, %v1701
    %v1878 = vpack.c.b16 %v1718, %v1702
    %v1879 = vpack.c.b16 %v1719, %v1703
    %v1880 = vpack.c.b16 %v1720, %v1704
    %v1881 = vpack.c.b16 %v1721, %v1705
    %v1882 = vpack.c.b16 %v1722, %v1706
    %v1883 = vpack.c.b16 %v1739, %v1723
    %v1884 = vpack.c.b16 %v1740, %v1724
    %v1885 = vpack.c.b16 %v1741, %v1725
    %v1886 = vpack.c.b16 %v1742, %v1726
    %v1887 = vpack.c.b16 %v1743, %v1727
    %v1888 = vpack.c.b16 %v1744, %v1728
    %v1889 = vpack.c.b16 %v1745, %v1729
    %v1890 = vpack.c.b16 %v1746, %v1730
    %v1891 = vpack.c.b16 %v1747, %v1731
    %v1892 = vpack.c.b16 %v1748, %v1732
    %v1893 = vpack.c.b16 %v1749, %v1733
    %v1894 = vpack.c.b16 %v1750, %v1734
    %v1895 = vpack.c.b16 %v1751, %v1735
    %v1896 = vpack.c.b16 %v1752, %v1736
    %v1897 = vpack.c.b16 %v1753, %v1737
    %v1898 = vpack.c.b16 %v1754, %v1738
    %v1899 = vpack.c.b16 %v1771, %v1755
    %v1900 = vpack.c.b16 %v1772, %v1756
    %v1901 = vpack.c.b16 %v1773, %v1757
    %v1902 = vpack.c.b16 %v1774, %v1758
    %v1903 = vpack.c.b16 %v1775, %v1759
    %v1904 = vpack.c.b16 %v1776, %v1760
    %v1905 = vpack.c.b16 %v1777, %v1761
    %v1906 = vpack.c.b16 %v1778, %v1762
    %v1907 = vpack.c.b16 %v1779, %v1763
    %v1908 = vpack.c.b16 %v1780, %v1764
    %v1909 = vpack.c.b16 %v1781, %v1765
    %v1910 = vpack.c.b16 %v1782, %v1766
    %v1911 = vpack.c.b16 %v1783, %v1767
    %v1912 = vpack.c.b16 %v1784, %v1768
    %v1913 = vpack.c.b16 %v1785, %v1769
    %v1914 = vpack.c.b16 %v1786, %v1770
    %2043 = vmatprep.subr.bf16.mxu0 %v1788
    %2044 = vmatpush1.bf16.xpose.msra.mxu0 %v1787
    %2045 = vmatprep.subr.bf16.mxu0 %v1804
    %2046 = vmatpush1.bf16.xpose.msra.mxu0 %v1803
    %2047 = vmatprep.subr.bf16.mxu0 %v1820
    %2048 = vmatpush1.bf16.xpose.msra.mxu0 %v1819
    %2049 = vmatprep.subr.bf16.mxu0 %v1836
    %2050 = vmatpush1.bf16.xpose.msra.mxu0 %v1835
    %2051 = vmatprep.subr.bf16.mxu0 %v1852
    %2052 = vmatpush1.bf16.xpose.msra.mxu0 %v1851
    %2053 = vmatprep.subr.bf16.mxu0 %v1868
    %2054 = vmatpush1.bf16.xpose.msra.mxu0 %v1867
    %2055 = vmatprep.subr.bf16.mxu0 %v1884
    %2056 = vmatpush1.bf16.xpose.msra.mxu0 %v1883
    %2057 = vmatprep.subr.bf16.mxu0 %v1900
    %2058 = vmatpush1.bf16.xpose.msra.mxu0 %v1899
    %2059 = vmatprep.subr.bf16.mxu0 0
    %2060 = vmatpush1.bf16.xpose.msra.mxu0 0
    %2061 = vmatprep.subr.bf16.mxu0 0
    %2062 = vmatpush1.bf16.xpose.msra.mxu0 0
    %2063 = vmatprep.subr.bf16.mxu0 0
    %2064 = vmatpush1.bf16.xpose.msra.mxu0 0
    %2065 = vmatprep.subr.bf16.mxu0 0
    %2066 = vmatpush1.bf16.xpose.msra.mxu0 0
    %2067 = vmatprep.subr.bf16.mxu0 0
    %2068 = vmatpush1.bf16.xpose.msra.mxu0 0
    %2069 = vmatprep.subr.bf16.mxu0 0
    %2070 = vmatpush1.bf16.xpose.msra.mxu0 0
    %2071 = vmatprep.subr.bf16.mxu0 0
    %2072 = vmatpush1.bf16.xpose.msra.mxu0 0
    %2073 = vmatprep.subr.bf16.mxu0 0
    %2074 = vmatpush1.bf16.xpose.msra.mxu0 0
    %2075 = vmatprep.mubr.bf16.mxu0 %v1372
    %2076 = vmatmul.mubr.bf16.gmra.mrb[0].mxu0 %v1371
    %v2077 = vpop.f32.mrb[0].mxu0
    %v2078 = vadd.f32 0.0, %v2077
    %v2079 = vpop.f32.mrb[0].mxu0
    %v2080 = vpop.f32.mrb[0].mxu0
    %v2081 = vpop.f32.mrb[0].mxu0
    %2082 = vdwg.mxu0
    %2083 = vmatprep.subr.bf16.mxu0 %v1790
    %2084 = vmatpush1.bf16.xpose.msra.mxu0 %v1789
    %2085 = vmatprep.subr.bf16.mxu0 %v1806
    %2086 = vmatpush1.bf16.xpose.msra.mxu0 %v1805
    %2087 = vmatprep.subr.bf16.mxu0 %v1822
    %2088 = vmatpush1.bf16.xpose.msra.mxu0 %v1821
    %2089 = vmatprep.subr.bf16.mxu0 %v1838
    %2090 = vmatpush1.bf16.xpose.msra.mxu0 %v1837
    %2091 = vmatprep.subr.bf16.mxu0 %v1854
    %2092 = vmatpush1.bf16.xpose.msra.mxu0 %v1853
    %2093 = vmatprep.subr.bf16.mxu0 %v1870
    %2094 = vmatpush1.bf16.xpose.msra.mxu0 %v1869
    %2095 = vmatprep.subr.bf16.mxu0 %v1886
    %2096 = vmatpush1.bf16.xpose.msra.mxu0 %v1885
    %2097 = vmatprep.subr.bf16.mxu0 %v1902
    %2098 = vmatpush1.bf16.xpose.msra.mxu0 %v1901
    %2099 = vmatprep.subr.bf16.mxu0 0
    %2100 = vmatpush1.bf16.xpose.msra.mxu0 0
    %2101 = vmatprep.subr.bf16.mxu0 0
    %2102 = vmatpush1.bf16.xpose.msra.mxu0 0
    %2103 = vmatprep.subr.bf16.mxu0 0
    %2104 = vmatpush1.bf16.xpose.msra.mxu0 0
    %2105 = vmatprep.subr.bf16.mxu0 0
    %2106 = vmatpush1.bf16.xpose.msra.mxu0 0
    %2107 = vmatprep.subr.bf16.mxu0 0
    %2108 = vmatpush1.bf16.xpose.msra.mxu0 0
    %2109 = vmatprep.subr.bf16.mxu0 0
    %2110 = vmatpush1.bf16.xpose.msra.mxu0 0
    %2111 = vmatprep.subr.bf16.mxu0 0
    %2112 = vmatpush1.bf16.xpose.msra.mxu0 0
    %2113 = vmatprep.subr.bf16.mxu0 0
    %2114 = vmatpush1.bf16.xpose.msra.mxu0 0
    %2115 = vmatprep.mubr.bf16.mxu0 %v1374
    %2116 = vmatmul.mubr.bf16.gmra.mrb[0].mxu0 %v1373
    %v2117 = vpop.f32.mrb[0].mxu0
    %v2118 = vadd.f32 %v2078, %v2117
    %v2119 = vpop.f32.mrb[0].mxu0
    %v2120 = vpop.f32.mrb[0].mxu0
    %v2121 = vpop.f32.mrb[0].mxu0
    %2122 = vdwg.mxu0
    %2123 = vmatprep.subr.bf16.mxu0 %v1792
    %2124 = vmatpush1.bf16.xpose.msra.mxu0 %v1791
    %2125 = vmatprep.subr.bf16.mxu0 %v1808
    %2126 = vmatpush1.bf16.xpose.msra.mxu0 %v1807
    %2127 = vmatprep.subr.bf16.mxu0 %v1824
    %2128 = vmatpush1.bf16.xpose.msra.mxu0 %v1823
    %2129 = vmatprep.subr.bf16.mxu0 %v1840
    %2130 = vmatpush1.bf16.xpose.msra.mxu0 %v1839
    %2131 = vmatprep.subr.bf16.mxu0 %v1856
    %2132 = vmatpush1.bf16.xpose.msra.mxu0 %v1855
    %2133 = vmatprep.subr.bf16.mxu0 %v1872
    %2134 = vmatpush1.bf16.xpose.msra.mxu0 %v1871
    %2135 = vmatprep.subr.bf16.mxu0 %v1888
    %2136 = vmatpush1.bf16.xpose.msra.mxu0 %v1887
    %2137 = vmatprep.subr.bf16.mxu0 %v1904
    %2138 = vmatpush1.bf16.xpose.msra.mxu0 %v1903
    %2139 = vmatprep.subr.bf16.mxu0 0
    %2140 = vmatpush1.bf16.xpose.msra.mxu0 0
    %2141 = vmatprep.subr.bf16.mxu0 0
    %2142 = vmatpush1.bf16.xpose.msra.mxu0 0
    %2143 = vmatprep.subr.bf16.mxu0 0
    %2144 = vmatpush1.bf16.xpose.msra.mxu0 0
    %2145 = vmatprep.subr.bf16.mxu0 0
    %2146 = vmatpush1.bf16.xpose.msra.mxu0 0
    %2147 = vmatprep.subr.bf16.mxu0 0
    %2148 = vmatpush1.bf16.xpose.msra.mxu0 0
    %2149 = vmatprep.subr.bf16.mxu0 0
    %2150 = vmatpush1.bf16.xpose.msra.mxu0 0
    %2151 = vmatprep.subr.bf16.mxu0 0
    %2152 = vmatpush1.bf16.xpose.msra.mxu0 0
    %2153 = vmatprep.subr.bf16.mxu0 0
    %2154 = vmatpush1.bf16.xpose.msra.mxu0 0
    %2155 = vmatprep.mubr.bf16.mxu0 %v1376
    %2156 = vmatmul.mubr.bf16.gmra.mrb[0].mxu0 %v1375
    %v2157 = vpop.f32.mrb[0].mxu0
    %v2158 = vadd.f32 %v2118, %v2157
    %v2159 = vpop.f32.mrb[0].mxu0
    %v2160 = vpop.f32.mrb[0].mxu0
    %v2161 = vpop.f32.mrb[0].mxu0
    %2162 = vdwg.mxu0
    %2163 = vmatprep.subr.bf16.mxu0 %v1794
    %2164 = vmatpush1.bf16.xpose.msra.mxu0 %v1793
    %2165 = vmatprep.subr.bf16.mxu0 %v1810
    %2166 = vmatpush1.bf16.xpose.msra.mxu0 %v1809
    %2167 = vmatprep.subr.bf16.mxu0 %v1826
    %2168 = vmatpush1.bf16.xpose.msra.mxu0 %v1825
    %2169 = vmatprep.subr.bf16.mxu0 %v1842
    %2170 = vmatpush1.bf16.xpose.msra.mxu0 %v1841
    %2171 = vmatprep.subr.bf16.mxu0 %v1858
    %2172 = vmatpush1.bf16.xpose.msra.mxu0 %v1857
    %2173 = vmatprep.subr.bf16.mxu0 %v1874
    %2174 = vmatpush1.bf16.xpose.msra.mxu0 %v1873
    %2175 = vmatprep.subr.bf16.mxu0 %v1890
    %2176 = vmatpush1.bf16.xpose.msra.mxu0 %v1889
    %2177 = vmatprep.subr.bf16.mxu0 %v1906
    %2178 = vmatpush1.bf16.xpose.msra.mxu0 %v1905
    %2179 = vmatprep.subr.bf16.mxu0 0
    %2180 = vmatpush1.bf16.xpose.msra.mxu0 0
    %2181 = vmatprep.subr.bf16.mxu0 0
    %2182 = vmatpush1.bf16.xpose.msra.mxu0 0
    %2183 = vmatprep.subr.bf16.mxu0 0
    %2184 = vmatpush1.bf16.xpose.msra.mxu0 0
    %2185 = vmatprep.subr.bf16.mxu0 0
    %2186 = vmatpush1.bf16.xpose.msra.mxu0 0
    %2187 = vmatprep.subr.bf16.mxu0 0
    %2188 = vmatpush1.bf16.xpose.msra.mxu0 0
    %2189 = vmatprep.subr.bf16.mxu0 0
    %2190 = vmatpush1.bf16.xpose.msra.mxu0 0
    %2191 = vmatprep.subr.bf16.mxu0 0
    %2192 = vmatpush1.bf16.xpose.msra.mxu0 0
    %2193 = vmatprep.subr.bf16.mxu0 0
    %2194 = vmatpush1.bf16.xpose.msra.mxu0 0
    %2195 = vmatprep.mubr.bf16.mxu0 %v1378
    %2196 = vmatmul.mubr.bf16.gmra.mrb[0].mxu0 %v1377
    %v2197 = vpop.f32.mrb[0].mxu0
    %v2198 = vadd.f32 %v2158, %v2197
    %v2199 = vpop.f32.mrb[0].mxu0
    %v2200 = vpop.f32.mrb[0].mxu0
    %v2201 = vpop.f32.mrb[0].mxu0
    %2202 = vdwg.mxu0
    %2203 = vmatprep.subr.bf16.mxu0 %v1796
    %2204 = vmatpush1.bf16.xpose.msra.mxu0 %v1795
    %2205 = vmatprep.subr.bf16.mxu0 %v1812
    %2206 = vmatpush1.bf16.xpose.msra.mxu0 %v1811
    %2207 = vmatprep.subr.bf16.mxu0 %v1828
    %2208 = vmatpush1.bf16.xpose.msra.mxu0 %v1827
    %2209 = vmatprep.subr.bf16.mxu0 %v1844
    %2210 = vmatpush1.bf16.xpose.msra.mxu0 %v1843
    %2211 = vmatprep.subr.bf16.mxu0 %v1860
    %2212 = vmatpush1.bf16.xpose.msra.mxu0 %v1859
    %2213 = vmatprep.subr.bf16.mxu0 %v1876
    %2214 = vmatpush1.bf16.xpose.msra.mxu0 %v1875
    %2215 = vmatprep.subr.bf16.mxu0 %v1892
    %2216 = vmatpush1.bf16.xpose.msra.mxu0 %v1891
    %2217 = vmatprep.subr.bf16.mxu0 %v1908
    %2218 = vmatpush1.bf16.xpose.msra.mxu0 %v1907
    %2219 = vmatprep.subr.bf16.mxu0 0
    %2220 = vmatpush1.bf16.xpose.msra.mxu0 0
    %2221 = vmatprep.subr.bf16.mxu0 0
    %2222 = vmatpush1.bf16.xpose.msra.mxu0 0
    %2223 = vmatprep.subr.bf16.mxu0 0
    %2224 = vmatpush1.bf16.xpose.msra.mxu0 0
    %2225 = vmatprep.subr.bf16.mxu0 0
    %2226 = vmatpush1.bf16.xpose.msra.mxu0 0
    %2227 = vmatprep.subr.bf16.mxu0 0
    %2228 = vmatpush1.bf16.xpose.msra.mxu0 0
    %2229 = vmatprep.subr.bf16.mxu0 0
    %2230 = vmatpush1.bf16.xpose.msra.mxu0 0
    %2231 = vmatprep.subr.bf16.mxu0 0
    %2232 = vmatpush1.bf16.xpose.msra.mxu0 0
    %2233 = vmatprep.subr.bf16.mxu0 0
    %2234 = vmatpush1.bf16.xpose.msra.mxu0 0
    %2235 = vmatprep.mubr.bf16.mxu0 %v1380
    %2236 = vmatmul.mubr.bf16.gmra.mrb[0].mxu0 %v1379
    %v2237 = vpop.f32.mrb[0].mxu0
    %v2238 = vadd.f32 %v2198, %v2237
    %v2239 = vpop.f32.mrb[0].mxu0
    %v2240 = vpop.f32.mrb[0].mxu0
    %v2241 = vpop.f32.mrb[0].mxu0
    %2242 = vdwg.mxu0
    %2243 = vmatprep.subr.bf16.mxu0 %v1798
    %2244 = vmatpush1.bf16.xpose.msra.mxu0 %v1797
    %2245 = vmatprep.subr.bf16.mxu0 %v1814
    %2246 = vmatpush1.bf16.xpose.msra.mxu0 %v1813
    %2247 = vmatprep.subr.bf16.mxu0 %v1830
    %2248 = vmatpush1.bf16.xpose.msra.mxu0 %v1829
    %2249 = vmatprep.subr.bf16.mxu0 %v1846
    %2250 = vmatpush1.bf16.xpose.msra.mxu0 %v1845
    %2251 = vmatprep.subr.bf16.mxu0 %v1862
    %2252 = vmatpush1.bf16.xpose.msra.mxu0 %v1861
    %2253 = vmatprep.subr.bf16.mxu0 %v1878
    %2254 = vmatpush1.bf16.xpose.msra.mxu0 %v1877
    %2255 = vmatprep.subr.bf16.mxu0 %v1894
    %2256 = vmatpush1.bf16.xpose.msra.mxu0 %v1893
    %2257 = vmatprep.subr.bf16.mxu0 %v1910
    %2258 = vmatpush1.bf16.xpose.msra.mxu0 %v1909
    %2259 = vmatprep.subr.bf16.mxu0 0
    %2260 = vmatpush1.bf16.xpose.msra.mxu0 0
    %2261 = vmatprep.subr.bf16.mxu0 0
    %2262 = vmatpush1.bf16.xpose.msra.mxu0 0
    %2263 = vmatprep.subr.bf16.mxu0 0
    %2264 = vmatpush1.bf16.xpose.msra.mxu0 0
    %2265 = vmatprep.subr.bf16.mxu0 0
    %2266 = vmatpush1.bf16.xpose.msra.mxu0 0
    %2267 = vmatprep.subr.bf16.mxu0 0
    %2268 = vmatpush1.bf16.xpose.msra.mxu0 0
    %2269 = vmatprep.subr.bf16.mxu0 0
    %2270 = vmatpush1.bf16.xpose.msra.mxu0 0
    %2271 = vmatprep.subr.bf16.mxu0 0
    %2272 = vmatpush1.bf16.xpose.msra.mxu0 0
    %2273 = vmatprep.subr.bf16.mxu0 0
    %2274 = vmatpush1.bf16.xpose.msra.mxu0 0
    %2275 = vmatprep.mubr.bf16.mxu0 %v1382
    %2276 = vmatmul.mubr.bf16.gmra.mrb[0].mxu0 %v1381
    %v2277 = vpop.f32.mrb[0].mxu0
    %v2278 = vadd.f32 %v2238, %v2277
    %v2279 = vpop.f32.mrb[0].mxu0
    %v2280 = vpop.f32.mrb[0].mxu0
    %v2281 = vpop.f32.mrb[0].mxu0
    %2282 = vdwg.mxu0
    %2283 = vmatprep.subr.bf16.mxu0 %v1800
    %2284 = vmatpush1.bf16.xpose.msra.mxu0 %v1799
    %2285 = vmatprep.subr.bf16.mxu0 %v1816
    %2286 = vmatpush1.bf16.xpose.msra.mxu0 %v1815
    %2287 = vmatprep.subr.bf16.mxu0 %v1832
    %2288 = vmatpush1.bf16.xpose.msra.mxu0 %v1831
    %2289 = vmatprep.subr.bf16.mxu0 %v1848
    %2290 = vmatpush1.bf16.xpose.msra.mxu0 %v1847
    %2291 = vmatprep.subr.bf16.mxu0 %v1864
    %2292 = vmatpush1.bf16.xpose.msra.mxu0 %v1863
    %2293 = vmatprep.subr.bf16.mxu0 %v1880
    %2294 = vmatpush1.bf16.xpose.msra.mxu0 %v1879
    %2295 = vmatprep.subr.bf16.mxu0 %v1896
    %2296 = vmatpush1.bf16.xpose.msra.mxu0 %v1895
    %2297 = vmatprep.subr.bf16.mxu0 %v1912
    %2298 = vmatpush1.bf16.xpose.msra.mxu0 %v1911
    %2299 = vmatprep.subr.bf16.mxu0 0
    %2300 = vmatpush1.bf16.xpose.msra.mxu0 0
    %2301 = vmatprep.subr.bf16.mxu0 0
    %2302 = vmatpush1.bf16.xpose.msra.mxu0 0
    %2303 = vmatprep.subr.bf16.mxu0 0
    %2304 = vmatpush1.bf16.xpose.msra.mxu0 0
    %2305 = vmatprep.subr.bf16.mxu0 0
    %2306 = vmatpush1.bf16.xpose.msra.mxu0 0
    %2307 = vmatprep.subr.bf16.mxu0 0
    %2308 = vmatpush1.bf16.xpose.msra.mxu0 0
    %2309 = vmatprep.subr.bf16.mxu0 0
    %2310 = vmatpush1.bf16.xpose.msra.mxu0 0
    %2311 = vmatprep.subr.bf16.mxu0 0
    %2312 = vmatpush1.bf16.xpose.msra.mxu0 0
    %2313 = vmatprep.subr.bf16.mxu0 0
    %2314 = vmatpush1.bf16.xpose.msra.mxu0 0
    %2315 = vmatprep.mubr.bf16.mxu0 %v1384
    %2316 = vmatmul.mubr.bf16.gmra.mrb[0].mxu0 %v1383
    %v2317 = vpop.f32.mrb[0].mxu0
    %v2318 = vadd.f32 %v2278, %v2317
    %v2319 = vpop.f32.mrb[0].mxu0
    %v2320 = vpop.f32.mrb[0].mxu0
    %v2321 = vpop.f32.mrb[0].mxu0
    %2322 = vdwg.mxu0
    %2323 = vmatprep.subr.bf16.mxu0 %v1802
    %2324 = vmatpush1.bf16.xpose.msra.mxu0 %v1801
    %2325 = vmatprep.subr.bf16.mxu0 %v1818
    %2326 = vmatpush1.bf16.xpose.msra.mxu0 %v1817
    %2327 = vmatprep.subr.bf16.mxu0 %v1834
    %2328 = vmatpush1.bf16.xpose.msra.mxu0 %v1833
    %2329 = vmatprep.subr.bf16.mxu0 %v1850
    %2330 = vmatpush1.bf16.xpose.msra.mxu0 %v1849
    %2331 = vmatprep.subr.bf16.mxu0 %v1866
    %2332 = vmatpush1.bf16.xpose.msra.mxu0 %v1865
    %2333 = vmatprep.subr.bf16.mxu0 %v1882
    %2334 = vmatpush1.bf16.xpose.msra.mxu0 %v1881
    %2335 = vmatprep.subr.bf16.mxu0 %v1898
    %2336 = vmatpush1.bf16.xpose.msra.mxu0 %v1897
    %2337 = vmatprep.subr.bf16.mxu0 %v1914
    %2338 = vmatpush1.bf16.xpose.msra.mxu0 %v1913
    %2339 = vmatprep.subr.bf16.mxu0 0
    %2340 = vmatpush1.bf16.xpose.msra.mxu0 0
    %2341 = vmatprep.subr.bf16.mxu0 0
    %2342 = vmatpush1.bf16.xpose.msra.mxu0 0
    %2343 = vmatprep.subr.bf16.mxu0 0
    %2344 = vmatpush1.bf16.xpose.msra.mxu0 0
    %2345 = vmatprep.subr.bf16.mxu0 0
    %2346 = vmatpush1.bf16.xpose.msra.mxu0 0
    %2347 = vmatprep.subr.bf16.mxu0 0
    %2348 = vmatpush1.bf16.xpose.msra.mxu0 0
    %2349 = vmatprep.subr.bf16.mxu0 0
    %2350 = vmatpush1.bf16.xpose.msra.mxu0 0
    %2351 = vmatprep.subr.bf16.mxu0 0
    %2352 = vmatpush1.bf16.xpose.msra.mxu0 0
    %2353 = vmatprep.subr.bf16.mxu0 0
    %2354 = vmatpush1.bf16.xpose.msra.mxu0 0
    %2355 = vmatprep.mubr.bf16.mxu0 %v1386
    %2356 = vmatmul.mubr.bf16.gmra.mrb[0].mxu0 %v1385
    %v2357 = vpop.f32.mrb[0].mxu0
    %v2358 = vadd.f32 %v2318, %v2357
    %v2359 = vpop.f32.mrb[0].mxu0
    %v2360 = vpop.f32.mrb[0].mxu0
    %v2361 = vpop.f32.mrb[0].mxu0
    %2362 = vdwg.mxu0
    %2363 = vst [vmem:[%s6] sm:$0xff] %v2358
    // Predicated region
    $region30: #{_head_forward.1} parent=1 // pred_check
      _
    $region31: #{_head_forward.1} parent=1 // pred_check_branch
      %2365 = sbr.rel (0) target = $region33
    $region32: #{_head_forward.1} parent=1 // pred_region
      _
    $region33: #{_head_forward.1} parent=1 // pred_fallthru
      _
    // Predicated region
    $region34: #{_head_forward.1} parent=1 // pred_check
      _
    $region35: #{_head_forward.1} parent=1 // pred_check_branch
      %2367 = sbr.rel (0) target = $region37
    $region36: #{_head_forward.1} parent=1 // pred_region
      _
    $region37: #{_head_forward.1} parent=1 // pred_fallthru
      _
    // Predicated region
    $region38: #{_head_forward.1} parent=1 // pred_check
      _
    $region39: #{_head_forward.1} parent=1 // pred_check_branch
      %2369 = sbr.rel (0) target = $region41
    $region40: #{_head_forward.1} parent=1 // pred_region
      _
    $region41: #{_head_forward.1} parent=1 // pred_fallthru
      _
    // Predicated region
    $region42: #{_head_forward.1} parent=1 // pred_check
      _
    $region43: #{_head_forward.1} parent=1 // pred_check_branch
      %2371 = sbr.rel (0) target = $region45
    $region44: #{_head_forward.1} parent=1 // pred_region
      _
    $region45: #{_head_forward.1} parent=1 // pred_fallthru
      _
    %2372 = vsyncpa [#allocation3], 1
    %2373 = vsyncpa [#allocation5], 1

</llo_original>
